<compile_context>
chip_gen: v7x
topology: tpu7x:2x2x1
jax: 0.10.0
libtpu: 0.0.40
codegen_flags: <defaults>
</compile_context>

<pallas_src>
import functools
import math

import jax
import jax.numpy as jnp
import numpy as np
from jax import lax
from jax.experimental import pallas as pl
from jax.experimental.pallas import tpu as pltpu


# ----------------------------------------------------------------------------- kernel
def _transformer_kernel(
    x_ref, mask_ref,
    ln1_g_ref, ln1_b_ref,
    q_wt_ref, k_wt_ref, v_wt_ref,
    q_b_ref, k_b_ref, v_b_ref,
    out_wt_ref, out_b_ref,
    ln2_g_ref, ln2_b_ref,
    fc1_wt_ref, fc1_b_ref,
    fc2_wt_ref, fc2_b_ref,
    o_ref,
    *, num_heads, true_e, true_d, batch, seq, eps=1e-5,
):
    """One grid step = one encoder layer over the whole (lane-padded) activation slab.

    x/o blocks are [R, Ep] with R = batch*seq; the output block index is constant across
    the layer grid axis, so o_ref is the resident running activation (read previous layer's
    result, write this layer's result)."""
    l = pl.program_id(0)
    H = num_heads
    B, S = batch, seq

    # Seed the resident activation from the HBM input on the first layer only.
    @pl.when(l == 0)
    def _():
        o_ref[...] = x_ref[...]

    x = o_ref[...].astype(jnp.float32)              # [R, Ep], pad lanes are zero
    R, Ep = x.shape
    HDp = q_wt_ref.shape[-1]
    Dp = HDp // H

    # Valid-lane mask for LayerNorm over the true embedding width.
    lane_valid = lax.broadcasted_iota(jnp.int32, (1, Ep), 1) < true_e
    inv_e = 1.0 / true_e

    def layer_norm(v, g, b):
        mu = jnp.sum(v, axis=-1, keepdims=True) * inv_e       # pad lanes are zero
        d = v - mu
        var = jnp.sum(jnp.where(lane_valid, d * d, 0.0),
                      axis=-1, keepdims=True) * inv_e
        # g/b are zero in pad lanes -> normalized output stays zero-padded.
        return d * lax.rsqrt(var + eps) * g + b

    # ---- LayerNorm 1 + attention input projections (bf16 MXU, f32 accumulate) ----
    xn = layer_norm(x, ln1_g_ref[0], ln1_b_ref[0])
    xn_b = xn.astype(jnp.bfloat16)

    q = jnp.dot(xn_b, q_wt_ref[0], preferred_element_type=jnp.float32) + q_b_ref[0]
    k = jnp.dot(xn_b, k_wt_ref[0], preferred_element_type=jnp.float32) + k_b_ref[0]
    v = jnp.dot(xn_b, v_wt_ref[0], preferred_element_type=jnp.float32) + v_b_ref[0]
    # q/k/v: [R, H*Dp]; each head owns a 128-lane-aligned group, pad lanes are zero.

    mask = mask_ref[...]                            # [B, S, S] f32, shared across heads
    scale = 1.0 / math.sqrt(true_d)

    # ---- multi-head attention: static head unroll over vreg-aligned 128-lane groups ----
    ho_heads = []
    for h in range(H):
        sl = slice(h * Dp, (h + 1) * Dp)            # 128-lane aligned -> no relayout
        qh = q[:, sl].reshape(B, S, Dp).astype(jnp.bfloat16)
        kh = k[:, sl].reshape(B, S, Dp).astype(jnp.bfloat16)
        vh = v[:, sl].reshape(B, S, Dp).astype(jnp.bfloat16)
        s = jnp.einsum("bqd,bkd->bqk", qh, kh,
                       preferred_element_type=jnp.float32) * scale + mask
        s = s - jnp.max(s, axis=-1, keepdims=True)
        p = jnp.exp(s)
        p = p * pl.reciprocal(jnp.sum(p, axis=-1, keepdims=True), approx=False)
        ho_heads.append(jnp.einsum("bqk,bkd->bqd", p.astype(jnp.bfloat16), vh,
                                   preferred_element_type=jnp.float32))   # [B, S, Dp]
    ho = ho_heads[0] if H == 1 else jnp.concatenate(ho_heads, axis=-1)    # [B, S, H*Dp]

    # Single out-projection matmul over the head-concatenated (padded) activations.
    attn = jnp.dot(ho.reshape(R, HDp).astype(jnp.bfloat16), out_wt_ref[0],
                   preferred_element_type=jnp.float32) + out_b_ref[0]

    # ---- residual 1 ----
    x = x + attn

    # ---- LayerNorm 2 + MLP (fc1 -> ReLU -> fc2), dropout_rate = 0 ----
    xn2 = layer_norm(x, ln2_g_ref[0], ln2_b_ref[0]).astype(jnp.bfloat16)
    h1 = jnp.maximum(jnp.dot(xn2, fc1_wt_ref[0],
                             preferred_element_type=jnp.float32) + fc1_b_ref[0], 0.0)
    h2 = jnp.dot(h1.astype(jnp.bfloat16), fc2_wt_ref[0],
                 preferred_element_type=jnp.float32) + fc2_b_ref[0]

    # ---- residual 2 : write the running activation back (resident output block) ----
    o_ref[...] = (x + h2).astype(o_ref.dtype)


# ----------------------------------------------------------------------------- prep
def _round_up(x, m):
    return (x + m - 1) // m * m


_PARAM_NAMES = ["ln1_g", "ln1_b", "q_wt", "k_wt", "v_wt", "q_b", "k_b", "v_b",
                "out_wt", "out_b", "ln2_g", "ln2_b", "fc1_wt", "fc1_b", "fc2_wt", "fc2_b"]


def prepare_transformer_params(layer_params, num_heads):
    """One-time prep: transpose, lane-pad to multiples of 128 (per-head for q/k/v/out),
    cast weights to bf16, and stack all layers along a leading L axis."""
    E = layer_params[0]["ln1_g"].shape[0]
    M = layer_params[0]["fc1_w"].shape[0]
    H = num_heads
    assert E % H == 0
    D = E // H
    Ep = _round_up(E, 128)
    Dp = _round_up(D, 128)
    Mp = _round_up(M, 128)
    wdt = jnp.bfloat16

    def pad2(a, r, c):
        return jnp.pad(a, ((0, r - a.shape[0]), (0, c - a.shape[1])))

    def pad1(a, n):
        return jnp.pad(a, ((0, n - a.shape[0]),))

    def head_pad_cols(w_t):      # [E, H*D] -> [E, H*Dp]   (per-head column padding)
        return jnp.pad(w_t.reshape(E, H, D),
                       ((0, 0), (0, 0), (0, Dp - D))).reshape(E, H * Dp)

    def head_pad_rows(w):        # [H*D, X] -> [H*Dp, X]   (per-head row padding)
        return jnp.pad(w.reshape(H, D, -1),
                       ((0, 0), (0, Dp - D), (0, 0))).reshape(H * Dp, -1)

    stk = {n: [] for n in _PARAM_NAMES}
    for p in layer_params:
        in_w, in_b = p["in_w"], p["in_b"]                    # [3E, E], [3E]
        q_w, k_w, v_w = in_w[0:E], in_w[E:2 * E], in_w[2 * E:3 * E]
        q_b, k_b, v_b = in_b[0:E], in_b[E:2 * E], in_b[2 * E:3 * E]

        def prep_in_w(w):        # torch Linear-style [E_out, E_in] -> padded [Ep, H*Dp]
            return jnp.pad(head_pad_cols(w.T), ((0, Ep - E), (0, 0))).astype(wdt)

        def prep_in_b(b):        # [E] -> [1, H*Dp]
            return jnp.pad(b.reshape(H, D), ((0, 0), (0, Dp - D))).reshape(1, H * Dp)

        stk["q_wt"].append(prep_in_w(q_w))
        stk["k_wt"].append(prep_in_w(k_w))
        stk["v_wt"].append(prep_in_w(v_w))
        stk["q_b"].append(prep_in_b(q_b))
        stk["k_b"].append(prep_in_b(k_b))
        stk["v_b"].append(prep_in_b(v_b))

        out_wt = head_pad_rows(p["out_w"].T)                 # [H*Dp, E]
        stk["out_wt"].append(jnp.pad(out_wt, ((0, 0), (0, Ep - E))).astype(wdt))
        stk["out_b"].append(pad1(p["out_b"], Ep).reshape(1, Ep))

        stk["ln1_g"].append(pad1(p["ln1_g"], Ep).reshape(1, Ep))
        stk["ln1_b"].append(pad1(p["ln1_b"], Ep).reshape(1, Ep))
        stk["ln2_g"].append(pad1(p["ln2_g"], Ep).reshape(1, Ep))
        stk["ln2_b"].append(pad1(p["ln2_b"], Ep).reshape(1, Ep))

        stk["fc1_wt"].append(pad2(p["fc1_w"].T, Ep, Mp).astype(wdt))
        stk["fc1_b"].append(pad1(p["fc1_b"], Mp).reshape(1, Mp))
        stk["fc2_wt"].append(pad2(p["fc2_w"].T, Mp, Ep).astype(wdt))
        stk["fc2_b"].append(pad1(p["fc2_b"], Ep).reshape(1, Ep))

    prepped = {n: jnp.stack(v, axis=0) for n, v in stk.items()}
    meta = dict(E=E, M=M, H=H, D=D, Ep=Ep, Dp=Dp, Mp=Mp, L=len(layer_params))
    return prepped, meta


# ----------------------------------------------------------------------------- wrapper
def transformer_pallas(x_sne, mask_nss, prepped, meta):
    """x_sne: [n_imgs(S), n_voxels(N), emb]; mask_nss: [N, S, S] additive float mask
    (shared over heads, as in the torch wrapper's mask.repeat)."""
    S, N, E = x_sne.shape
    assert E == meta["E"]
    Ep, H, D, L = meta["Ep"], meta["H"], meta["D"], meta["L"]
    R = N * S

    # Single transpose + flatten; zero-pad lanes to Ep (pad lanes stay zero in-kernel).
    x2 = jnp.transpose(x_sne, (1, 0, 2)).reshape(R, E)
    x2 = jnp.pad(x2, ((0, 0), (0, Ep - E)))

    kernel = functools.partial(_transformer_kernel,
                               num_heads=H, true_e=E, true_d=D, batch=N, seq=S)

    def layer_spec(a):
        nd = a.ndim
        return pl.BlockSpec((1,) + a.shape[1:], lambda l, nd=nd: (l,) + (0,) * (nd - 1))

    in_specs = [
        pl.BlockSpec((R, Ep), lambda l: (0, 0)),        # x (resident across layers)
        pl.BlockSpec((N, S, S), lambda l: (0, 0, 0)),   # mask (resident, head-shared)
    ] + [layer_spec(prepped[n]) for n in _PARAM_NAMES]

    out2 = pl.pallas_call(
        kernel,
        out_shape=jax.ShapeDtypeStruct((R, Ep), x_sne.dtype),
        grid=(L,),
        in_specs=in_specs,
        # Constant block index across the layer axis -> output stays resident in VMEM
        # and is the carried activation; written back to HBM once at the end.
        out_specs=pl.BlockSpec((R, Ep), lambda l: (0, 0)),
        compiler_params=pltpu.CompilerParams(dimension_semantics=("arbitrary",)),
    )(x2, mask_nss, *[prepped[n] for n in _PARAM_NAMES])

    out = out2[:, :E].reshape(N, S, E)
    return jnp.transpose(out, (1, 0, 2))                # back to [S, N, E]


# ----------------------------------------------------------------------------- reference
def _ln_ref(x, g, b, eps=1e-5):
    mu = x.mean(-1, keepdims=True)
    var = ((x - mu) ** 2).mean(-1, keepdims=True)
    return (x - mu) / jnp.sqrt(var + eps) * g + b


def _encoder_block_ref(x, mask, p, H):
    # x: [N, S, E], mask: [N*H, S, S]
    N, S, E = x.shape
    D = E // H
    xn = _ln_ref(x, p["ln1_g"], p["ln1_b"])
    qkv = xn @ p["in_w"].T + p["in_b"]
    q, k, v = jnp.split(qkv, 3, axis=-1)
    q = q.reshape(N, S, H, D).transpose(0, 2, 1, 3)
    k = k.reshape(N, S, H, D).transpose(0, 2, 1, 3)
    v = v.reshape(N, S, H, D).transpose(0, 2, 1, 3)
    scores = jnp.einsum("nhsd,nhtd->nhst", q, k) / math.sqrt(D)
    scores = scores + mask.reshape(N, H, S, S)
    attn = jax.nn.softmax(scores, axis=-1)
    out = jnp.einsum("nhst,nhtd->nhsd", attn, v).transpose(0, 2, 1, 3).reshape(N, S, E)
    out = out @ p["out_w"].T + p["out_b"]
    x = x + out
    xn2 = _ln_ref(x, p["ln2_g"], p["ln2_b"])
    h = jax.nn.relu(xn2 @ p["fc1_w"].T + p["fc1_b"])
    h = h @ p["fc2_w"].T + p["fc2_b"]
    return x + h


def transformer_ref(x_sne, mask, layer_params, num_heads):
    b, s, t = mask.shape
    if num_heads > 1:
        mask_n = jnp.tile(mask, (1, num_heads, 1)).reshape(b * num_heads, s, t)
    else:
        mask_n = mask
    x = jnp.transpose(x_sne, (1, 0, 2))
    for p in layer_params:
        x = _encoder_block_ref(x, mask_n, p, num_heads)
    return jnp.transpose(x, (1, 0, 2))


# ----------------------------------------------------------------------------- params
def init_layer_params(key, emb_dim, mlp_dim):
    ks = jax.random.split(key, 4)
    E, M = emb_dim, mlp_dim
    return {
        "ln1_g": jnp.ones((E,), jnp.float32),
        "ln1_b": jnp.zeros((E,), jnp.float32),
        # MultiheadAttention: in_proj_weight [3E,E] (xavier-ish), biases zero
        "in_w": (jax.random.normal(ks[0], (3 * E, E), jnp.float32)
                 * math.sqrt(2.0 / (4 * E))),
        "in_b": jnp.zeros((3 * E,), jnp.float32),
        "out_w": (jax.random.normal(ks[1], (E, E), jnp.float32)
                  * math.sqrt(1.0 / E)),
        "out_b": jnp.zeros((E,), jnp.float32),
        "ln2_g": jnp.ones((E,), jnp.float32),
        "ln2_b": jnp.zeros((E,), jnp.float32),
        # MlpBlock: kaiming_normal_ weights, zero biases
        "fc1_w": (jax.random.normal(ks[2], (M, E), jnp.float32)
                  * math.sqrt(2.0 / E)),
        "fc1_b": jnp.zeros((M,), jnp.float32),
        "fc2_w": (jax.random.normal(ks[3], (E, M), jnp.float32)
                  * math.sqrt(2.0 / M)),
        "fc2_b": jnp.zeros((E,), jnp.float32),
    }


# ----------------------------------------------------------------------------- main
if __name__ == "__main__":
    # Transformer(emb_dim=32, mlp_dim=64, num_layers=2, num_heads=1)
    S, N, E, M = 8, 4, 32, 64          # n_imgs(seq), n_voxels(batch), emb, mlp
    num_layers, num_heads = 2, 1

    key = jax.random.PRNGKey(0)
    kx, kmask, kp = jax.random.split(key, 3)
    x = jax.random.normal(kx, (S, N, E), jnp.float32)               # [n_imgs, n_voxels, C]
    mask = jax.random.normal(kmask, (N, S, S), jnp.float32) * 0.1   # additive attn mask

    layer_params = [init_layer_params(k, E, M)
                    for k in jax.random.split(kp, num_layers)]

    # One-time weight prep (transpose / pad / bf16 cast / stack over layers) outside the
    # jitted forward, so no per-forward prep ops sit in front of the kernel launch.
    prepped, meta = prepare_transformer_params(layer_params, num_heads)

    run = jax.jit(functools.partial(transformer_pallas, meta=meta))
    out = jax.block_until_ready(run(x, mask, prepped))

    ref = transformer_ref(x, mask, layer_params, num_heads)
    # bf16 MXU operands (exact softmax reciprocal) -> modest tolerance vs the f32 reference.
    np.testing.assert_allclose(np.asarray(out), np.asarray(ref),
                               rtol=3e-2, atol=3e-2)
    assert out.shape == (S, N, E)
    print("KERNEL_OK")
</pallas_src>

<mosaic_0001>
module attributes {stable_mosaic.version = 11 : i64} {
  func.func @_transformer_kernel(%arg0: i32, %arg1: memref<32x128xf32, #tpu.memory_space<vmem>>, %arg2: memref<4x8x8xf32, #tpu.memory_space<vmem>>, %arg3: memref<1x1x128xf32, #tpu.memory_space<vmem>>, %arg4: memref<1x1x128xf32, #tpu.memory_space<vmem>>, %arg5: memref<1x128x128xbf16, #tpu.memory_space<vmem>>, %arg6: memref<1x128x128xbf16, #tpu.memory_space<vmem>>, %arg7: memref<1x128x128xbf16, #tpu.memory_space<vmem>>, %arg8: memref<1x1x128xf32, #tpu.memory_space<vmem>>, %arg9: memref<1x1x128xf32, #tpu.memory_space<vmem>>, %arg10: memref<1x1x128xf32, #tpu.memory_space<vmem>>, %arg11: memref<1x128x128xbf16, #tpu.memory_space<vmem>>, %arg12: memref<1x1x128xf32, #tpu.memory_space<vmem>>, %arg13: memref<1x1x128xf32, #tpu.memory_space<vmem>>, %arg14: memref<1x1x128xf32, #tpu.memory_space<vmem>>, %arg15: memref<1x128x128xbf16, #tpu.memory_space<vmem>>, %arg16: memref<1x1x128xf32, #tpu.memory_space<vmem>>, %arg17: memref<1x128x128xbf16, #tpu.memory_space<vmem>>, %arg18: memref<1x1x128xf32, #tpu.memory_space<vmem>>, %arg19: memref<32x128xf32, #tpu.memory_space<vmem>>) attributes {dimension_semantics = [#tpu.dimension_semantics<arbitrary>], iteration_bounds = array<i64: 2>, scalar_prefetch = 0 : i64, scratch_operands = 0 : i64, tpu.core_type = #tpu.core_type<tc>, window_params = [{pipeline_mode = #tpu.pipeline_mode<synchronous>, transform_indices = @transform_0, window_bounds = array<i64: 32, 128>}, {pipeline_mode = #tpu.pipeline_mode<synchronous>, transform_indices = @transform_1, window_bounds = array<i64: 4, 8, 8>}, {transform_indices = @transform_2, window_bounds = array<i64: 1, 1, 128>}, {transform_indices = @transform_3, window_bounds = array<i64: 1, 1, 128>}, {transform_indices = @transform_4, window_bounds = array<i64: 1, 128, 128>}, {transform_indices = @transform_5, window_bounds = array<i64: 1, 128, 128>}, {transform_indices = @transform_6, window_bounds = array<i64: 1, 128, 128>}, {transform_indices = @transform_7, window_bounds = array<i64: 1, 1, 128>}, {transform_indices = @transform_8, window_bounds = array<i64: 1, 1, 128>}, {transform_indices = @transform_9, window_bounds = array<i64: 1, 1, 128>}, {transform_indices = @transform_10, window_bounds = array<i64: 1, 128, 128>}, {transform_indices = @transform_11, window_bounds = array<i64: 1, 1, 128>}, {transform_indices = @transform_12, window_bounds = array<i64: 1, 1, 128>}, {transform_indices = @transform_13, window_bounds = array<i64: 1, 1, 128>}, {transform_indices = @transform_14, window_bounds = array<i64: 1, 128, 128>}, {transform_indices = @transform_15, window_bounds = array<i64: 1, 1, 128>}, {transform_indices = @transform_16, window_bounds = array<i64: 1, 128, 128>}, {transform_indices = @transform_17, window_bounds = array<i64: 1, 1, 128>}, {pipeline_mode = #tpu.pipeline_mode<synchronous>, transform_indices = @transform_18, window_bounds = array<i64: 32, 128>}]} {
    %c0_i32 = arith.constant 0 : i32
    %0 = arith.cmpi eq, %arg0, %c0_i32 : i32
    %1 = arith.extui %0 : i1 to i32
    %c0_i32_0 = arith.constant 0 : i32
    %2 = arith.cmpi ne, %1, %c0_i32_0 : i32
    scf.if %2 {
      %c0_78 = arith.constant 0 : index
      %c0_79 = arith.constant 0 : index
      %138 = vector.load %arg1[%c0_78, %c0_79] : memref<32x128xf32, #tpu.memory_space<vmem>>, vector<32x128xf32>
      %c0_80 = arith.constant 0 : index
      %c0_81 = arith.constant 0 : index
      %139 = vector.load %arg19[%c0_80, %c0_81] : memref<32x128xf32, #tpu.memory_space<vmem>>, vector<32x128xf32>
      tpu.vector_store %arg19[%c0_80, %c0_81], %138 {strides = array<i32>} : memref<32x128xf32, #tpu.memory_space<vmem>>, vector<32x128xf32>,
    } else {
    }
    %c0 = arith.constant 0 : index
    %c0_1 = arith.constant 0 : index
    %3 = vector.load %arg19[%c0, %c0_1] : memref<32x128xf32, #tpu.memory_space<vmem>>, vector<32x128xf32>
    %4 = tpu.iota {dimensions = array<i32: 1>} : vector<1x128xi32>
    %c32_i32 = arith.constant 32 : i32
    %5 = vector.broadcast %c32_i32 : i32 to vector<1x128xi32>
    %6 = arith.cmpi slt, %4, %5 : vector<1x128xi32>
    %c0_2 = arith.constant 0 : index
    %c0_3 = arith.constant 0 : index
    %c0_4 = arith.constant 0 : index
    %7 = vector.load %arg3[%c0_2, %c0_3, %c0_4] : memref<1x1x128xf32, #tpu.memory_space<vmem>>, vector<1x1x128xf32>
    %8 = vector.shape_cast %7 : vector<1x1x128xf32> to vector<1x128xf32>
    %c0_5 = arith.constant 0 : index
    %c0_6 = arith.constant 0 : index
    %c0_7 = arith.constant 0 : index
    %9 = vector.load %arg4[%c0_5, %c0_6, %c0_7] : memref<1x1x128xf32, #tpu.memory_space<vmem>>, vector<1x1x128xf32>
    %10 = vector.shape_cast %9 : vector<1x1x128xf32> to vector<1x128xf32>
    %cst = arith.constant dense<0.000000e+00> : vector<32xf32>
    %11 = vector.multi_reduction <add>, %3, %cst [1] : vector<32x128xf32> to vector<32xf32>
    %12 = vector.shape_cast %11 : vector<32xf32> to vector<32x1xf32>
    %cst_8 = arith.constant 3.125000e-02 : f32
    %13 = vector.broadcast %cst_8 : f32 to vector<32x1xf32>
    %14 = arith.mulf %12, %13 : vector<32x1xf32>
    %15 = vector.broadcast %14 : vector<32x1xf32> to vector<32x128xf32>
    %16 = arith.subf %3, %15 : vector<32x128xf32>
    %17 = arith.mulf %16, %16 : vector<32x128xf32>
    %cst_9 = arith.constant 0.000000e+00 : f32
    %18 = vector.shape_cast %6 : vector<1x128xi1> to vector<1x128xi1>
    %19 = vector.broadcast %18 : vector<1x128xi1> to vector<32x128xi1>
    %20 = vector.broadcast %cst_9 : f32 to vector<32x128xf32>
    %21 = arith.select %19, %17, %20 : vector<32x128xi1>, vector<32x128xf32>
    %cst_10 = arith.constant dense<0.000000e+00> : vector<32xf32>
    %22 = vector.multi_reduction <add>, %21, %cst_10 [1] : vector<32x128xf32> to vector<32xf32>
    %23 = vector.shape_cast %22 : vector<32xf32> to vector<32x1xf32>
    %cst_11 = arith.constant 3.125000e-02 : f32
    %24 = vector.broadcast %cst_11 : f32 to vector<32x1xf32>
    %25 = arith.mulf %23, %24 : vector<32x1xf32>
    %cst_12 = arith.constant 9.99999974E-6 : f32
    %26 = vector.broadcast %cst_12 : f32 to vector<32x1xf32>
    %27 = arith.addf %25, %26 : vector<32x1xf32>
    %28 = math.rsqrt %27 : vector<32x1xf32>
    %29 = vector.broadcast %28 : vector<32x1xf32> to vector<32x128xf32>
    %30 = arith.mulf %16, %29 : vector<32x128xf32>
    %31 = vector.broadcast %8 : vector<1x128xf32> to vector<32x128xf32>
    %32 = arith.mulf %30, %31 : vector<32x128xf32>
    %33 = vector.broadcast %10 : vector<1x128xf32> to vector<32x128xf32>
    %34 = arith.addf %32, %33 : vector<32x128xf32>
    %35 = arith.truncf %34 : vector<32x128xf32> to vector<32x128xbf16>
    %c0_13 = arith.constant 0 : index
    %c0_14 = arith.constant 0 : index
    %c0_15 = arith.constant 0 : index
    %36 = vector.load %arg5[%c0_13, %c0_14, %c0_15] : memref<1x128x128xbf16, #tpu.memory_space<vmem>>, vector<1x128x128xbf16>
    %37 = vector.shape_cast %36 : vector<1x128x128xbf16> to vector<128x128xbf16>
    %cst_16 = arith.constant dense<0.000000e+00> : vector<32x128xf32>
    %38 = tpu.matmul %35, %37, %cst_16 {dimension_numbers = #tpu.dot_dimension_numbers<[1], [0], [0], [1], [0, 0, 1, 1], [], []>} : vector<32x128xbf16>, vector<128x128xbf16>, vector<32x128xf32> -> vector<32x128xf32>
    %c0_17 = arith.constant 0 : index
    %c0_18 = arith.constant 0 : index
    %c0_19 = arith.constant 0 : index
    %39 = vector.load %arg8[%c0_17, %c0_18, %c0_19] : memref<1x1x128xf32, #tpu.memory_space<vmem>>, vector<1x1x128xf32>
    %40 = vector.shape_cast %39 : vector<1x1x128xf32> to vector<1x128xf32>
    %41 = vector.broadcast %40 : vector<1x128xf32> to vector<32x128xf32>
    %42 = arith.addf %38, %41 : vector<32x128xf32>
    %c0_20 = arith.constant 0 : index
    %c0_21 = arith.constant 0 : index
    %c0_22 = arith.constant 0 : index
    %43 = vector.load %arg6[%c0_20, %c0_21, %c0_22] : memref<1x128x128xbf16, #tpu.memory_space<vmem>>, vector<1x128x128xbf16>
    %44 = vector.shape_cast %43 : vector<1x128x128xbf16> to vector<128x128xbf16>
    %cst_23 = arith.constant dense<0.000000e+00> : vector<32x128xf32>
    %45 = tpu.matmul %35, %44, %cst_23 {dimension_numbers = #tpu.dot_dimension_numbers<[1], [0], [0], [1], [0, 0, 1, 1], [], []>} : vector<32x128xbf16>, vector<128x128xbf16>, vector<32x128xf32> -> vector<32x128xf32>
    %c0_24 = arith.constant 0 : index
    %c0_25 = arith.constant 0 : index
    %c0_26 = arith.constant 0 : index
    %46 = vector.load %arg9[%c0_24, %c0_25, %c0_26] : memref<1x1x128xf32, #tpu.memory_space<vmem>>, vector<1x1x128xf32>
    %47 = vector.shape_cast %46 : vector<1x1x128xf32> to vector<1x128xf32>
    %48 = vector.broadcast %47 : vector<1x128xf32> to vector<32x128xf32>
    %49 = arith.addf %45, %48 : vector<32x128xf32>
    %c0_27 = arith.constant 0 : index
    %c0_28 = arith.constant 0 : index
    %c0_29 = arith.constant 0 : index
    %50 = vector.load %arg7[%c0_27, %c0_28, %c0_29] : memref<1x128x128xbf16, #tpu.memory_space<vmem>>, vector<1x128x128xbf16>
    %51 = vector.shape_cast %50 : vector<1x128x128xbf16> to vector<128x128xbf16>
    %cst_30 = arith.constant dense<0.000000e+00> : vector<32x128xf32>
    %52 = tpu.matmul %35, %51, %cst_30 {dimension_numbers = #tpu.dot_dimension_numbers<[1], [0], [0], [1], [0, 0, 1, 1], [], []>} : vector<32x128xbf16>, vector<128x128xbf16>, vector<32x128xf32> -> vector<32x128xf32>
    %c0_31 = arith.constant 0 : index
    %c0_32 = arith.constant 0 : index
    %c0_33 = arith.constant 0 : index
    %53 = vector.load %arg10[%c0_31, %c0_32, %c0_33] : memref<1x1x128xf32, #tpu.memory_space<vmem>>, vector<1x1x128xf32>
    %54 = vector.shape_cast %53 : vector<1x1x128xf32> to vector<1x128xf32>
    %55 = vector.broadcast %54 : vector<1x128xf32> to vector<32x128xf32>
    %56 = arith.addf %52, %55 : vector<32x128xf32>
    %c0_34 = arith.constant 0 : index
    %c0_35 = arith.constant 0 : index
    %c0_36 = arith.constant 0 : index
    %57 = vector.load %arg2[%c0_34, %c0_35, %c0_36] : memref<4x8x8xf32, #tpu.memory_space<vmem>>, vector<4x8x8xf32>
    %58 = vector.shape_cast %42 : vector<32x128xf32> to vector<4x8x128xf32>
    %59 = arith.truncf %58 : vector<4x8x128xf32> to vector<4x8x128xbf16>
    %60 = vector.shape_cast %49 : vector<32x128xf32> to vector<4x8x128xf32>
    %61 = arith.truncf %60 : vector<4x8x128xf32> to vector<4x8x128xbf16>
    %62 = vector.shape_cast %56 : vector<32x128xf32> to vector<4x8x128xf32>
    %63 = arith.truncf %62 : vector<4x8x128xf32> to vector<4x8x128xbf16>
    "tpu.trace_start"() <{level = 10 : i32, message = "bqd,bkd->bqk"}> : () -> ()
    %cst_37 = arith.constant dense<0.000000e+00> : vector<4x8x8xf32>
    %64 = tpu.matmul %59, %61, %cst_37 {dimension_numbers = #tpu.dot_dimension_numbers<[2], [2], [1], [1], [0, 0, 0, 1, 1, 1], [0], [0]>} : vector<4x8x128xbf16>, vector<4x8x128xbf16>, vector<4x8x8xf32> -> vector<4x8x8xf32>
    "tpu.trace_stop"() : () -> ()
    %cst_38 = arith.constant 0.176776692 : f32
    %65 = vector.broadcast %cst_38 : f32 to vector<4x8x8xf32>
    %66 = arith.mulf %64, %65 : vector<4x8x8xf32>
    %67 = arith.addf %66, %57 : vector<4x8x8xf32>
    %cst_39 = arith.constant dense<0xFF800000> : vector<4x8xf32>
    %68 = vector.multi_reduction <maximumf>, %67, %cst_39 [2] : vector<4x8x8xf32> to vector<4x8xf32>
    %69 = vector.shape_cast %68 : vector<4x8xf32> to vector<4x8x1xf32>
    %70 = vector.broadcast %69 : vector<4x8x1xf32> to vector<4x8x8xf32>
    %71 = arith.subf %67, %70 : vector<4x8x8xf32>
    %72 = math.exp %71 : vector<4x8x8xf32>
    %cst_40 = arith.constant dense<0.000000e+00> : vector<4x8xf32>
    %73 = vector.multi_reduction <add>, %72, %cst_40 [2] : vector<4x8x8xf32> to vector<4x8xf32>
    %74 = vector.shape_cast %73 : vector<4x8xf32> to vector<4x8x1xf32>
    %75 = tpu.reciprocal %74 : vector<4x8x1xf32> -> vector<4x8x1xf32>
    %76 = vector.broadcast %75 : vector<4x8x1xf32> to vector<4x8x8xf32>
    %77 = arith.mulf %72, %76 : vector<4x8x8xf32>
    %78 = arith.truncf %77 : vector<4x8x8xf32> to vector<4x8x8xbf16>
    "tpu.trace_start"() <{level = 10 : i32, message = "bqk,bkd->bqd"}> : () -> ()
    %cst_41 = arith.constant dense<0.000000e+00> : vector<4x8x128xf32>
    %79 = tpu.matmul %78, %63, %cst_41 {dimension_numbers = #tpu.dot_dimension_numbers<[2], [1], [1], [2], [0, 0, 0, 1, 1, 2], [0], [0]>} : vector<4x8x8xbf16>, vector<4x8x128xbf16>, vector<4x8x128xf32> -> vector<4x8x128xf32>
    "tpu.trace_stop"() : () -> ()
    %80 = vector.shape_cast %79 : vector<4x8x128xf32> to vector<32x128xf32>
    %81 = arith.truncf %80 : vector<32x128xf32> to vector<32x128xbf16>
    %c0_42 = arith.constant 0 : index
    %c0_43 = arith.constant 0 : index
    %c0_44 = arith.constant 0 : index
    %82 = vector.load %arg11[%c0_42, %c0_43, %c0_44] : memref<1x128x128xbf16, #tpu.memory_space<vmem>>, vector<1x128x128xbf16>
    %83 = vector.shape_cast %82 : vector<1x128x128xbf16> to vector<128x128xbf16>
    %cst_45 = arith.constant dense<0.000000e+00> : vector<32x128xf32>
    %84 = tpu.matmul %81, %83, %cst_45 {dimension_numbers = #tpu.dot_dimension_numbers<[1], [0], [0], [1], [0, 0, 1, 1], [], []>} : vector<32x128xbf16>, vector<128x128xbf16>, vector<32x128xf32> -> vector<32x128xf32>
    %c0_46 = arith.constant 0 : index
    %c0_47 = arith.constant 0 : index
    %c0_48 = arith.constant 0 : index
    %85 = vector.load %arg12[%c0_46, %c0_47, %c0_48] : memref<1x1x128xf32, #tpu.memory_space<vmem>>, vector<1x1x128xf32>
    %86 = vector.shape_cast %85 : vector<1x1x128xf32> to vector<1x128xf32>
    %87 = vector.broadcast %86 : vector<1x128xf32> to vector<32x128xf32>
    %88 = arith.addf %84, %87 : vector<32x128xf32>
    %89 = arith.addf %3, %88 : vector<32x128xf32>
    %c0_49 = arith.constant 0 : index
    %c0_50 = arith.constant 0 : index
    %c0_51 = arith.constant 0 : index
    %90 = vector.load %arg13[%c0_49, %c0_50, %c0_51] : memref<1x1x128xf32, #tpu.memory_space<vmem>>, vector<1x1x128xf32>
    %91 = vector.shape_cast %90 : vector<1x1x128xf32> to vector<1x128xf32>
    %c0_52 = arith.constant 0 : index
    %c0_53 = arith.constant 0 : index
    %c0_54 = arith.constant 0 : index
    %92 = vector.load %arg14[%c0_52, %c0_53, %c0_54] : memref<1x1x128xf32, #tpu.memory_space<vmem>>, vector<1x1x128xf32>
    %93 = vector.shape_cast %92 : vector<1x1x128xf32> to vector<1x128xf32>
    %cst_55 = arith.constant dense<0.000000e+00> : vector<32xf32>
    %94 = vector.multi_reduction <add>, %89, %cst_55 [1] : vector<32x128xf32> to vector<32xf32>
    %95 = vector.shape_cast %94 : vector<32xf32> to vector<32x1xf32>
    %cst_56 = arith.constant 3.125000e-02 : f32
    %96 = vector.broadcast %cst_56 : f32 to vector<32x1xf32>
    %97 = arith.mulf %95, %96 : vector<32x1xf32>
    %98 = vector.broadcast %97 : vector<32x1xf32> to vector<32x128xf32>
    %99 = arith.subf %89, %98 : vector<32x128xf32>
    %100 = arith.mulf %99, %99 : vector<32x128xf32>
    %cst_57 = arith.constant 0.000000e+00 : f32
    %101 = vector.shape_cast %6 : vector<1x128xi1> to vector<1x128xi1>
    %102 = vector.broadcast %101 : vector<1x128xi1> to vector<32x128xi1>
    %103 = vector.broadcast %cst_57 : f32 to vector<32x128xf32>
    %104 = arith.select %102, %100, %103 : vector<32x128xi1>, vector<32x128xf32>
    %cst_58 = arith.constant dense<0.000000e+00> : vector<32xf32>
    %105 = vector.multi_reduction <add>, %104, %cst_58 [1] : vector<32x128xf32> to vector<32xf32>
    %106 = vector.shape_cast %105 : vector<32xf32> to vector<32x1xf32>
    %cst_59 = arith.constant 3.125000e-02 : f32
    %107 = vector.broadcast %cst_59 : f32 to vector<32x1xf32>
    %108 = arith.mulf %106, %107 : vector<32x1xf32>
    %cst_60 = arith.constant 9.99999974E-6 : f32
    %109 = vector.broadcast %cst_60 : f32 to vector<32x1xf32>
    %110 = arith.addf %108, %109 : vector<32x1xf32>
    %111 = math.rsqrt %110 : vector<32x1xf32>
    %112 = vector.broadcast %111 : vector<32x1xf32> to vector<32x128xf32>
    %113 = arith.mulf %99, %112 : vector<32x128xf32>
    %114 = vector.broadcast %91 : vector<1x128xf32> to vector<32x128xf32>
    %115 = arith.mulf %113, %114 : vector<32x128xf32>
    %116 = vector.broadcast %93 : vector<1x128xf32> to vector<32x128xf32>
    %117 = arith.addf %115, %116 : vector<32x128xf32>
    %118 = arith.truncf %117 : vector<32x128xf32> to vector<32x128xbf16>
    %c0_61 = arith.constant 0 : index
    %c0_62 = arith.constant 0 : index
    %c0_63 = arith.constant 0 : index
    %119 = vector.load %arg15[%c0_61, %c0_62, %c0_63] : memref<1x128x128xbf16, #tpu.memory_space<vmem>>, vector<1x128x128xbf16>
    %120 = vector.shape_cast %119 : vector<1x128x128xbf16> to vector<128x128xbf16>
    %cst_64 = arith.constant dense<0.000000e+00> : vector<32x128xf32>
    %121 = tpu.matmul %118, %120, %cst_64 {dimension_numbers = #tpu.dot_dimension_numbers<[1], [0], [0], [1], [0, 0, 1, 1], [], []>} : vector<32x128xbf16>, vector<128x128xbf16>, vector<32x128xf32> -> vector<32x128xf32>
    %c0_65 = arith.constant 0 : index
    %c0_66 = arith.constant 0 : index
    %c0_67 = arith.constant 0 : index
    %122 = vector.load %arg16[%c0_65, %c0_66, %c0_67] : memref<1x1x128xf32, #tpu.memory_space<vmem>>, vector<1x1x128xf32>
    %123 = vector.shape_cast %122 : vector<1x1x128xf32> to vector<1x128xf32>
    %124 = vector.broadcast %123 : vector<1x128xf32> to vector<32x128xf32>
    %125 = arith.addf %121, %124 : vector<32x128xf32>
    %cst_68 = arith.constant 0.000000e+00 : f32
    %126 = vector.broadcast %cst_68 : f32 to vector<32x128xf32>
    %127 = arith.maximumf %125, %126 : vector<32x128xf32>
    %128 = arith.truncf %127 : vector<32x128xf32> to vector<32x128xbf16>
    %c0_69 = arith.constant 0 : index
    %c0_70 = arith.constant 0 : index
    %c0_71 = arith.constant 0 : index
    %129 = vector.load %arg17[%c0_69, %c0_70, %c0_71] : memref<1x128x128xbf16, #tpu.memory_space<vmem>>, vector<1x128x128xbf16>
    %130 = vector.shape_cast %129 : vector<1x128x128xbf16> to vector<128x128xbf16>
    %cst_72 = arith.constant dense<0.000000e+00> : vector<32x128xf32>
    %131 = tpu.matmul %128, %130, %cst_72 {dimension_numbers = #tpu.dot_dimension_numbers<[1], [0], [0], [1], [0, 0, 1, 1], [], []>} : vector<32x128xbf16>, vector<128x128xbf16>, vector<32x128xf32> -> vector<32x128xf32>
    %c0_73 = arith.constant 0 : index
    %c0_74 = arith.constant 0 : index
    %c0_75 = arith.constant 0 : index
    %132 = vector.load %arg18[%c0_73, %c0_74, %c0_75] : memref<1x1x128xf32, #tpu.memory_space<vmem>>, vector<1x1x128xf32>
    %133 = vector.shape_cast %132 : vector<1x1x128xf32> to vector<1x128xf32>
    %134 = vector.broadcast %133 : vector<1x128xf32> to vector<32x128xf32>
    %135 = arith.addf %131, %134 : vector<32x128xf32>
    %136 = arith.addf %89, %135 : vector<32x128xf32>
    %c0_76 = arith.constant 0 : index
    %c0_77 = arith.constant 0 : index
    %137 = vector.load %arg19[%c0_76, %c0_77] : memref<32x128xf32, #tpu.memory_space<vmem>>, vector<32x128xf32>
    tpu.vector_store %arg19[%c0_76, %c0_77], %136 {strides = array<i32>} : memref<32x128xf32, #tpu.memory_space<vmem>>, vector<32x128xf32>,
    return
  }
  func.func @transform_0(%arg0: i32) -> (i32, i32) {
    %c0_i32 = arith.constant 0 : i32
    %c0_i32_0 = arith.constant 0 : i32
    %c0_i32_1 = arith.constant 0 : i32
    return %c0_i32, %c0_i32_0 : i32, i32
  }
  func.func @transform_1(%arg0: i32) -> (i32, i32, i32) {
    %c0_i32 = arith.constant 0 : i32
    %c0_i32_0 = arith.constant 0 : i32
    %c0_i32_1 = arith.constant 0 : i32
    %c0_i32_2 = arith.constant 0 : i32
    return %c0_i32, %c0_i32_0, %c0_i32_1 : i32, i32, i32
  }
  func.func @transform_2(%arg0: i32) -> (i32, i32, i32) {
    %c0_i32 = arith.constant 0 : i32
    %c0_i32_0 = arith.constant 0 : i32
    %c0_i32_1 = arith.constant 0 : i32
    return %arg0, %c0_i32, %c0_i32_0 : i32, i32, i32
  }
  func.func @transform_3(%arg0: i32) -> (i32, i32, i32) {
    %c0_i32 = arith.constant 0 : i32
    %c0_i32_0 = arith.constant 0 : i32
    %c0_i32_1 = arith.constant 0 : i32
    return %arg0, %c0_i32, %c0_i32_0 : i32, i32, i32
  }
  func.func @transform_4(%arg0: i32) -> (i32, i32, i32) {
    %c0_i32 = arith.constant 0 : i32
    %c0_i32_0 = arith.constant 0 : i32
    %c0_i32_1 = arith.constant 0 : i32
    return %arg0, %c0_i32, %c0_i32_0 : i32, i32, i32
  }
  func.func @transform_5(%arg0: i32) -> (i32, i32, i32) {
    %c0_i32 = arith.constant 0 : i32
    %c0_i32_0 = arith.constant 0 : i32
    %c0_i32_1 = arith.constant 0 : i32
    return %arg0, %c0_i32, %c0_i32_0 : i32, i32, i32
  }
  func.func @transform_6(%arg0: i32) -> (i32, i32, i32) {
    %c0_i32 = arith.constant 0 : i32
    %c0_i32_0 = arith.constant 0 : i32
    %c0_i32_1 = arith.constant 0 : i32
    return %arg0, %c0_i32, %c0_i32_0 : i32, i32, i32
  }
  func.func @transform_7(%arg0: i32) -> (i32, i32, i32) {
    %c0_i32 = arith.constant 0 : i32
    %c0_i32_0 = arith.constant 0 : i32
    %c0_i32_1 = arith.constant 0 : i32
    return %arg0, %c0_i32, %c0_i32_0 : i32, i32, i32
  }
  func.func @transform_8(%arg0: i32) -> (i32, i32, i32) {
    %c0_i32 = arith.constant 0 : i32
    %c0_i32_0 = arith.constant 0 : i32
    %c0_i32_1 = arith.constant 0 : i32
    return %arg0, %c0_i32, %c0_i32_0 : i32, i32, i32
  }
  func.func @transform_9(%arg0: i32) -> (i32, i32, i32) {
    %c0_i32 = arith.constant 0 : i32
    %c0_i32_0 = arith.constant 0 : i32
    %c0_i32_1 = arith.constant 0 : i32
    return %arg0, %c0_i32, %c0_i32_0 : i32, i32, i32
  }
  func.func @transform_10(%arg0: i32) -> (i32, i32, i32) {
    %c0_i32 = arith.constant 0 : i32
    %c0_i32_0 = arith.constant 0 : i32
    %c0_i32_1 = arith.constant 0 : i32
    return %arg0, %c0_i32, %c0_i32_0 : i32, i32, i32
  }
  func.func @transform_11(%arg0: i32) -> (i32, i32, i32) {
    %c0_i32 = arith.constant 0 : i32
    %c0_i32_0 = arith.constant 0 : i32
    %c0_i32_1 = arith.constant 0 : i32
    return %arg0, %c0_i32, %c0_i32_0 : i32, i32, i32
  }
  func.func @transform_12(%arg0: i32) -> (i32, i32, i32) {
    %c0_i32 = arith.constant 0 : i32
    %c0_i32_0 = arith.constant 0 : i32
    %c0_i32_1 = arith.constant 0 : i32
    return %arg0, %c0_i32, %c0_i32_0 : i32, i32, i32
  }
  func.func @transform_13(%arg0: i32) -> (i32, i32, i32) {
    %c0_i32 = arith.constant 0 : i32
    %c0_i32_0 = arith.constant 0 : i32
    %c0_i32_1 = arith.constant 0 : i32
    return %arg0, %c0_i32, %c0_i32_0 : i32, i32, i32
  }
  func.func @transform_14(%arg0: i32) -> (i32, i32, i32) {
    %c0_i32 = arith.constant 0 : i32
    %c0_i32_0 = arith.constant 0 : i32
    %c0_i32_1 = arith.constant 0 : i32
    return %arg0, %c0_i32, %c0_i32_0 : i32, i32, i32
  }
  func.func @transform_15(%arg0: i32) -> (i32, i32, i32) {
    %c0_i32 = arith.constant 0 : i32
    %c0_i32_0 = arith.constant 0 : i32
    %c0_i32_1 = arith.constant 0 : i32
    return %arg0, %c0_i32, %c0_i32_0 : i32, i32, i32
  }
  func.func @transform_16(%arg0: i32) -> (i32, i32, i32) {
    %c0_i32 = arith.constant 0 : i32
    %c0_i32_0 = arith.constant 0 : i32
    %c0_i32_1 = arith.constant 0 : i32
    return %arg0, %c0_i32, %c0_i32_0 : i32, i32, i32
  }
  func.func @transform_17(%arg0: i32) -> (i32, i32, i32) {
    %c0_i32 = arith.constant 0 : i32
    %c0_i32_0 = arith.constant 0 : i32
    %c0_i32_1 = arith.constant 0 : i32
    return %arg0, %c0_i32, %c0_i32_0 : i32, i32, i32
  }
  func.func @transform_18(%arg0: i32) -> (i32, i32) {
    %c0_i32 = arith.constant 0 : i32
    %c0_i32_0 = arith.constant 0 : i32
    %c0_i32_1 = arith.constant 0 : i32
    return %c0_i32, %c0_i32_0 : i32, i32
  }
}

</mosaic_0001>

<llo_original>
// kernel: transformer_pallas.1
$region0: #{transformer_pallas.1}
  #allocation0 [shape = 'u32[]', space=smem, size = 0x4, offset = 0x4, fixed_abs, tag = 'smem constant byte address 0x4 - core index']
  #allocation1 [shape = 'u32[144,128]{1,0:T(1,128)}', space=vmem, size = 0x12000, scoped, tag = 'internal scratch']
  %s0 = inlined_call_operand.vmem [shape: f32[32,128], index: 0, kind: input, shape index: {}]
  %s1 = inlined_call_operand.vmem [shape: f32[4,8,8], index: 1, kind: input, shape index: {}]
  %s2 = inlined_call_operand.vmem [shape: f32[2,1,128], index: 2, kind: input, shape index: {}]
  %s3 = inlined_call_operand.vmem [shape: f32[2,1,128], index: 3, kind: input, shape index: {}]
  %s4 = inlined_call_operand.vmem [shape: bf16[2,128,128], index: 4, kind: input, shape index: {}]
  %s5 = inlined_call_operand.hbm [shape: bf16[2,128,128], index: 5, kind: input, shape index: {}]
  %s6 = inlined_call_operand.hbm [shape: bf16[2,128,128], index: 6, kind: input, shape index: {}]
  %s7 = inlined_call_operand.vmem [shape: f32[2,1,128], index: 7, kind: input, shape index: {}]
  %s8 = inlined_call_operand.vmem [shape: f32[2,1,128], index: 8, kind: input, shape index: {}]
  %s9 = inlined_call_operand.vmem [shape: f32[2,1,128], index: 9, kind: input, shape index: {}]
  %s10 = inlined_call_operand.hbm [shape: bf16[2,128,128], index: 10, kind: input, shape index: {}]
  %s11 = inlined_call_operand.vmem [shape: f32[2,1,128], index: 11, kind: input, shape index: {}]
  %s12 = inlined_call_operand.vmem [shape: f32[2,1,128], index: 12, kind: input, shape index: {}]
  %s13 = inlined_call_operand.vmem [shape: f32[2,1,128], index: 13, kind: input, shape index: {}]
  %s14 = inlined_call_operand.hbm [shape: bf16[2,128,128], index: 14, kind: input, shape index: {}]
  %s15 = inlined_call_operand.vmem [shape: f32[2,1,128], index: 15, kind: input, shape index: {}]
  %s16 = inlined_call_operand.hbm [shape: bf16[2,128,128], index: 16, kind: input, shape index: {}]
  %s17 = inlined_call_operand.vmem [shape: f32[2,1,128], index: 17, kind: input, shape index: {}]
  %s18 = inlined_call_operand.vmem [shape: f32[32,128], index: 18, kind: output, shape index: {}]
  %s19 = sld [smem:[#allocation0]]
  $region129: #{transformer_pallas.1} parent=0
    _
  %s21 = ssub.s32 1, %s19
  %s22 = scalar_select 0, %s21, %s19
  $region1: #{transformer_pallas.1} parent=0
    #allocation2 [shape = 'u8[65536]{0}', space=vmem, size = 0x10000, scoped, tag = 'input window, operand 5']
    #allocation3 [shape = 's32[2]{0}', space=sflag, size = 0x8, scoped, tag = 'scoped memory for transformer_pallas.1']
    #allocation4 [shape = 'u8[65536]{0}', space=vmem, size = 0x10000, scoped, tag = 'input window, operand 6']
    #allocation5 [shape = 's32[2]{0}', space=sflag, size = 0x8, scoped, tag = 'scoped memory for transformer_pallas.1']
    #allocation6 [shape = 'u8[65536]{0}', space=vmem, size = 0x10000, scoped, tag = 'input window, operand 10']
    #allocation7 [shape = 'u8[65536]{0}', space=vmem, size = 0x10000, scoped, tag = 'input window, operand 14']
    #allocation8 [shape = 's32[2]{0}', space=sflag, size = 0x8, scoped, tag = 'scoped memory for transformer_pallas.1']
    #allocation9 [shape = 'u8[65536]{0}', space=vmem, size = 0x10000, scoped, tag = 'input window, operand 16']
    %23 = vsyncpa [#allocation3], 0
    %s24 = scalar_lea.sflag [#allocation3], 1
    %25 = vsyncpa %s24, 0
    %26 = vsyncpa [#allocation5], 0
    %s27 = scalar_lea.sflag [#allocation5], 1
    %28 = vsyncpa %s27, 0
    %29 = vsyncpa [#allocation8], 0
    %s30 = scalar_lea.sflag [#allocation8], 1
    %31 = vsyncpa %s30, 0
    loop: start=0, step=1, limit=4
    $region2: #{transformer_pallas.1} parent=1 // loop_pre_header
      _
    $region3: #{transformer_pallas.1} parent=1 // loop_header
      %s33 = sphi 0, %s37
      %p34 = scmp.ge.s32.totalorder %s33, 4
      %s41 = sphi 0, %s41
      %s43 = sphi 0, %s41
      %s44 = sphi 0, %s43
      %s58 = sphi 0, %s44
      %s62 = sphi 0, %s62
      %s64 = sphi 0, %s62
      %s65 = sphi 0, %s64
      %s79 = sphi 0, %s65
      %s85 = sphi 0, %s87
      %s88 = sphi 0, %s85
      %s89 = sphi 0, %s88
      %s105 = sphi 0, %s89
      %s111 = sphi 0, %s113
      %s114 = sphi 0, %s111
      %s115 = sphi 0, %s114
      %s131 = sphi 0, %s115
      %s137 = sphi 0, %s139
      %s140 = sphi 0, %s137
      %s141 = sphi 0, %s140
      %s157 = sphi 0, %s141
      %s163 = sphi 0, %s165
      %s166 = sphi 0, %s163
      %s167 = sphi 0, %s166
      %s183 = sphi 0, %s167
      %s189 = sphi 0, %s191
      %s192 = sphi 0, %s189
      %s193 = sphi 0, %s192
      %s209 = sphi 0, %s193
      %s215 = sphi 0, %s217
      %s218 = sphi 0, %s215
      %s219 = sphi 0, %s218
      %s235 = sphi 0, %s219
      %s241 = sphi 0, %s243
      %s244 = sphi 0, %s241
      %s245 = sphi 0, %s244
      %s261 = sphi 0, %s245
      %s267 = sphi 0, %s269
      %s270 = sphi 0, %s267
      %s271 = sphi 0, %s270
      %s287 = sphi 0, %s271
      %s293 = sphi 0, %s295
      %s296 = sphi 0, %s293
      %s297 = sphi 0, %s296
      %s313 = sphi 0, %s297
      %s319 = sphi 0, %s321
      %s322 = sphi 0, %s319
      %s323 = sphi 0, %s322
      %s339 = sphi 0, %s323
      %s345 = sphi 0, %s347
      %s348 = sphi 0, %s345
      %s349 = sphi 0, %s348
      %s365 = sphi 0, %s349
      %s371 = sphi 0, %s373
      %s374 = sphi 0, %s371
      %s375 = sphi 0, %s374
      %s391 = sphi 0, %s375
      %s397 = sphi 0, %s399
      %s400 = sphi 0, %s397
      %s401 = sphi 0, %s400
      %s417 = sphi 0, %s401
      %s423 = sphi 0, %s425
      %s426 = sphi 0, %s423
      %s427 = sphi 0, %s426
      %s443 = sphi 0, %s427
      %s449 = sphi 0, %s451
      %s452 = sphi 0, %s449
      %s453 = sphi 0, %s452
      %s469 = sphi 0, %s453
      %s475 = sphi 0, %s477
      %s478 = sphi 0, %s475
      %s479 = sphi 0, %s478
      %s495 = sphi 0, %s479
      %s499 = sphi 0, %s499
      %s501 = sphi 0, %s499
      %s502 = sphi 0, %s501
      %s516 = sphi 0, %s502
    $region4: #{transformer_pallas.1} parent=1 // loop_header_branch
      %36 = sbr.rel (%p34) target = $region8
    $region5: #{transformer_pallas.1} parent=1 // loop_body
      %s38 = ssub.s32 %s33, 1
      %s39 = ssub.s32 %s33, 2
      %s40 = sadd.s32 %s33, 1
      %s42 = sadd.s32 %s41, 1
      %p45 = scmp.eq.s32.totalorder %s33, 1
      %p46 = scmp.ne.s32.totalorder %s41, %s43
      %p47 = scmp.eq.s32.totalorder %s33, 0
      %p48 = por %p46, %p47
      %p49 = scmp.ne.s32.totalorder %s41, %s43
      %p50 = scmp.eq.s32.totalorder %s38, 1
      %p51 = por %p49, %p50
      %p52 = scmp.ne.s32.totalorder %s43, %s44
      %p53 = scmp.eq.s32.totalorder %s38, 0
      %p54 = por %p52, %p53
      %p55 = scmp.ne.s32.totalorder %s43, %s44
      %p56 = scmp.eq.s32.totalorder %s39, 1
      %p57 = por %p55, %p56
      %p59 = scmp.ne.s32.totalorder %s44, %s58
      %p60 = scmp.eq.s32.totalorder %s39, 0
      %p61 = por %p59, %p60
      %s63 = sadd.s32 %s62, 1
      %p66 = scmp.eq.s32.totalorder %s33, 1
      %p67 = scmp.ne.s32.totalorder %s62, %s64
      %p68 = scmp.eq.s32.totalorder %s33, 0
      %p69 = por %p67, %p68
      %p70 = scmp.ne.s32.totalorder %s62, %s64
      %p71 = scmp.eq.s32.totalorder %s38, 1
      %p72 = por %p70, %p71
      %p73 = scmp.ne.s32.totalorder %s64, %s65
      %p74 = scmp.eq.s32.totalorder %s38, 0
      %p75 = por %p73, %p74
      %p76 = scmp.ne.s32.totalorder %s64, %s65
      %p77 = scmp.eq.s32.totalorder %s39, 1
      %p78 = por %p76, %p77
      %p80 = scmp.ne.s32.totalorder %s65, %s79
      %p81 = scmp.eq.s32.totalorder %s39, 0
      %p82 = por %p80, %p81
      %s83 = ssub.s32 %s33, %s40
      %p84 = scmp.eq.s32.totalorder %s83, 0
      %s86 = sadd.s32 %s85, 1
      %s87 = scalar_select %p84, %s85, %s86
      %p90 = pneg %p84
      %p91 = scmp.eq.s32.totalorder %s33, 1
      %p92 = por %p90, %p91
      %p93 = scmp.ne.s32.totalorder %s85, %s88
      %p94 = scmp.eq.s32.totalorder %s33, 0
      %p95 = por %p93, %p94
      %p96 = scmp.ne.s32.totalorder %s85, %s88
      %p97 = scmp.eq.s32.totalorder %s38, 1
      %p98 = por %p96, %p97
      %p99 = scmp.ne.s32.totalorder %s88, %s89
      %p100 = scmp.eq.s32.totalorder %s38, 0
      %p101 = por %p99, %p100
      %p102 = scmp.ne.s32.totalorder %s88, %s89
      %p103 = scmp.eq.s32.totalorder %s39, 1
      %p104 = por %p102, %p103
      %p106 = scmp.ne.s32.totalorder %s89, %s105
      %p107 = scmp.eq.s32.totalorder %s39, 0
      %p108 = por %p106, %p107
      %s109 = ssub.s32 %s33, %s40
      %p110 = scmp.eq.s32.totalorder %s109, 0
      %s112 = sadd.s32 %s111, 1
      %s113 = scalar_select %p110, %s111, %s112
      %p116 = pneg %p110
      %p117 = scmp.eq.s32.totalorder %s33, 1
      %p118 = por %p116, %p117
      %p119 = scmp.ne.s32.totalorder %s111, %s114
      %p120 = scmp.eq.s32.totalorder %s33, 0
      %p121 = por %p119, %p120
      %p122 = scmp.ne.s32.totalorder %s111, %s114
      %p123 = scmp.eq.s32.totalorder %s38, 1
      %p124 = por %p122, %p123
      %p125 = scmp.ne.s32.totalorder %s114, %s115
      %p126 = scmp.eq.s32.totalorder %s38, 0
      %p127 = por %p125, %p126
      %p128 = scmp.ne.s32.totalorder %s114, %s115
      %p129 = scmp.eq.s32.totalorder %s39, 1
      %p130 = por %p128, %p129
      %p132 = scmp.ne.s32.totalorder %s115, %s131
      %p133 = scmp.eq.s32.totalorder %s39, 0
      %p134 = por %p132, %p133
      %s135 = ssub.s32 %s33, %s40
      %p136 = scmp.eq.s32.totalorder %s135, 0
      %s138 = sadd.s32 %s137, 1
      %s139 = scalar_select %p136, %s137, %s138
      %p142 = pneg %p136
      %p143 = scmp.eq.s32.totalorder %s33, 1
      %p144 = por %p142, %p143
      %p145 = scmp.ne.s32.totalorder %s137, %s140
      %p146 = scmp.eq.s32.totalorder %s33, 0
      %p147 = por %p145, %p146
      %p148 = scmp.ne.s32.totalorder %s137, %s140
      %p149 = scmp.eq.s32.totalorder %s38, 1
      %p150 = por %p148, %p149
      %p151 = scmp.ne.s32.totalorder %s140, %s141
      %p152 = scmp.eq.s32.totalorder %s38, 0
      %p153 = por %p151, %p152
      %p154 = scmp.ne.s32.totalorder %s140, %s141
      %p155 = scmp.eq.s32.totalorder %s39, 1
      %p156 = por %p154, %p155
      %p158 = scmp.ne.s32.totalorder %s141, %s157
      %p159 = scmp.eq.s32.totalorder %s39, 0
      %p160 = por %p158, %p159
      %s161 = ssub.s32 %s33, %s40
      %p162 = scmp.eq.s32.totalorder %s161, 0
      %s164 = sadd.s32 %s163, 1
      %s165 = scalar_select %p162, %s163, %s164
      %p168 = pneg %p162
      %p169 = scmp.eq.s32.totalorder %s33, 1
      %p170 = por %p168, %p169
      %p171 = scmp.ne.s32.totalorder %s163, %s166
      %p172 = scmp.eq.s32.totalorder %s33, 0
      %p173 = por %p171, %p172
      %p174 = scmp.ne.s32.totalorder %s163, %s166
      %p175 = scmp.eq.s32.totalorder %s38, 1
      %p176 = por %p174, %p175
      %p177 = scmp.ne.s32.totalorder %s166, %s167
      %p178 = scmp.eq.s32.totalorder %s38, 0
      %p179 = por %p177, %p178
      %p180 = scmp.ne.s32.totalorder %s166, %s167
      %p181 = scmp.eq.s32.totalorder %s39, 1
      %p182 = por %p180, %p181
      %p184 = scmp.ne.s32.totalorder %s167, %s183
      %p185 = scmp.eq.s32.totalorder %s39, 0
      %p186 = por %p184, %p185
      %s187 = ssub.s32 %s33, %s40
      %p188 = scmp.eq.s32.totalorder %s187, 0
      %s190 = sadd.s32 %s189, 1
      %s191 = scalar_select %p188, %s189, %s190
      %p194 = pneg %p188
      %p195 = scmp.eq.s32.totalorder %s33, 1
      %p196 = por %p194, %p195
      %p197 = scmp.ne.s32.totalorder %s189, %s192
      %p198 = scmp.eq.s32.totalorder %s33, 0
      %p199 = por %p197, %p198
      %p200 = scmp.ne.s32.totalorder %s189, %s192
      %p201 = scmp.eq.s32.totalorder %s38, 1
      %p202 = por %p200, %p201
      %p203 = scmp.ne.s32.totalorder %s192, %s193
      %p204 = scmp.eq.s32.totalorder %s38, 0
      %p205 = por %p203, %p204
      %p206 = scmp.ne.s32.totalorder %s192, %s193
      %p207 = scmp.eq.s32.totalorder %s39, 1
      %p208 = por %p206, %p207
      %p210 = scmp.ne.s32.totalorder %s193, %s209
      %p211 = scmp.eq.s32.totalorder %s39, 0
      %p212 = por %p210, %p211
      %s213 = ssub.s32 %s33, %s40
      %p214 = scmp.eq.s32.totalorder %s213, 0
      %s216 = sadd.s32 %s215, 1
      %s217 = scalar_select %p214, %s215, %s216
      %p220 = pneg %p214
      %p221 = scmp.eq.s32.totalorder %s33, 1
      %p222 = por %p220, %p221
      %p223 = scmp.ne.s32.totalorder %s215, %s218
      %p224 = scmp.eq.s32.totalorder %s33, 0
      %p225 = por %p223, %p224
      %p226 = scmp.ne.s32.totalorder %s215, %s218
      %p227 = scmp.eq.s32.totalorder %s38, 1
      %p228 = por %p226, %p227
      %p229 = scmp.ne.s32.totalorder %s218, %s219
      %p230 = scmp.eq.s32.totalorder %s38, 0
      %p231 = por %p229, %p230
      %p232 = scmp.ne.s32.totalorder %s218, %s219
      %p233 = scmp.eq.s32.totalorder %s39, 1
      %p234 = por %p232, %p233
      %p236 = scmp.ne.s32.totalorder %s219, %s235
      %p237 = scmp.eq.s32.totalorder %s39, 0
      %p238 = por %p236, %p237
      %s239 = ssub.s32 %s33, %s40
      %p240 = scmp.eq.s32.totalorder %s239, 0
      %s242 = sadd.s32 %s241, 1
      %s243 = scalar_select %p240, %s241, %s242
      %p246 = pneg %p240
      %p247 = scmp.eq.s32.totalorder %s33, 1
      %p248 = por %p246, %p247
      %p249 = scmp.ne.s32.totalorder %s241, %s244
      %p250 = scmp.eq.s32.totalorder %s33, 0
      %p251 = por %p249, %p250
      %p252 = scmp.ne.s32.totalorder %s241, %s244
      %p253 = scmp.eq.s32.totalorder %s38, 1
      %p254 = por %p252, %p253
      %p255 = scmp.ne.s32.totalorder %s244, %s245
      %p256 = scmp.eq.s32.totalorder %s38, 0
      %p257 = por %p255, %p256
      %p258 = scmp.ne.s32.totalorder %s244, %s245
      %p259 = scmp.eq.s32.totalorder %s39, 1
      %p260 = por %p258, %p259
      %p262 = scmp.ne.s32.totalorder %s245, %s261
      %p263 = scmp.eq.s32.totalorder %s39, 0
      %p264 = por %p262, %p263
      %s265 = ssub.s32 %s33, %s40
      %p266 = scmp.eq.s32.totalorder %s265, 0
      %s268 = sadd.s32 %s267, 1
      %s269 = scalar_select %p266, %s267, %s268
      %p272 = pneg %p266
      %p273 = scmp.eq.s32.totalorder %s33, 1
      %p274 = por %p272, %p273
      %p275 = scmp.ne.s32.totalorder %s267, %s270
      %p276 = scmp.eq.s32.totalorder %s33, 0
      %p277 = por %p275, %p276
      %p278 = scmp.ne.s32.totalorder %s267, %s270
      %p279 = scmp.eq.s32.totalorder %s38, 1
      %p280 = por %p278, %p279
      %p281 = scmp.ne.s32.totalorder %s270, %s271
      %p282 = scmp.eq.s32.totalorder %s38, 0
      %p283 = por %p281, %p282
      %p284 = scmp.ne.s32.totalorder %s270, %s271
      %p285 = scmp.eq.s32.totalorder %s39, 1
      %p286 = por %p284, %p285
      %p288 = scmp.ne.s32.totalorder %s271, %s287
      %p289 = scmp.eq.s32.totalorder %s39, 0
      %p290 = por %p288, %p289
      %s291 = ssub.s32 %s33, %s40
      %p292 = scmp.eq.s32.totalorder %s291, 0
      %s294 = sadd.s32 %s293, 1
      %s295 = scalar_select %p292, %s293, %s294
      %p298 = pneg %p292
      %p299 = scmp.eq.s32.totalorder %s33, 1
      %p300 = por %p298, %p299
      %p301 = scmp.ne.s32.totalorder %s293, %s296
      %p302 = scmp.eq.s32.totalorder %s33, 0
      %p303 = por %p301, %p302
      %p304 = scmp.ne.s32.totalorder %s293, %s296
      %p305 = scmp.eq.s32.totalorder %s38, 1
      %p306 = por %p304, %p305
      %p307 = scmp.ne.s32.totalorder %s296, %s297
      %p308 = scmp.eq.s32.totalorder %s38, 0
      %p309 = por %p307, %p308
      %p310 = scmp.ne.s32.totalorder %s296, %s297
      %p311 = scmp.eq.s32.totalorder %s39, 1
      %p312 = por %p310, %p311
      %p314 = scmp.ne.s32.totalorder %s297, %s313
      %p315 = scmp.eq.s32.totalorder %s39, 0
      %p316 = por %p314, %p315
      %s317 = ssub.s32 %s33, %s40
      %p318 = scmp.eq.s32.totalorder %s317, 0
      %s320 = sadd.s32 %s319, 1
      %s321 = scalar_select %p318, %s319, %s320
      %p324 = pneg %p318
      %p325 = scmp.eq.s32.totalorder %s33, 1
      %p326 = por %p324, %p325
      %p327 = scmp.ne.s32.totalorder %s319, %s322
      %p328 = scmp.eq.s32.totalorder %s33, 0
      %p329 = por %p327, %p328
      %p330 = scmp.ne.s32.totalorder %s319, %s322
      %p331 = scmp.eq.s32.totalorder %s38, 1
      %p332 = por %p330, %p331
      %p333 = scmp.ne.s32.totalorder %s322, %s323
      %p334 = scmp.eq.s32.totalorder %s38, 0
      %p335 = por %p333, %p334
      %p336 = scmp.ne.s32.totalorder %s322, %s323
      %p337 = scmp.eq.s32.totalorder %s39, 1
      %p338 = por %p336, %p337
      %p340 = scmp.ne.s32.totalorder %s323, %s339
      %p341 = scmp.eq.s32.totalorder %s39, 0
      %p342 = por %p340, %p341
      %s343 = ssub.s32 %s33, %s40
      %p344 = scmp.eq.s32.totalorder %s343, 0
      %s346 = sadd.s32 %s345, 1
      %s347 = scalar_select %p344, %s345, %s346
      %p350 = pneg %p344
      %p351 = scmp.eq.s32.totalorder %s33, 1
      %p352 = por %p350, %p351
      %p353 = scmp.ne.s32.totalorder %s345, %s348
      %p354 = scmp.eq.s32.totalorder %s33, 0
      %p355 = por %p353, %p354
      %p356 = scmp.ne.s32.totalorder %s345, %s348
      %p357 = scmp.eq.s32.totalorder %s38, 1
      %p358 = por %p356, %p357
      %p359 = scmp.ne.s32.totalorder %s348, %s349
      %p360 = scmp.eq.s32.totalorder %s38, 0
      %p361 = por %p359, %p360
      %p362 = scmp.ne.s32.totalorder %s348, %s349
      %p363 = scmp.eq.s32.totalorder %s39, 1
      %p364 = por %p362, %p363
      %p366 = scmp.ne.s32.totalorder %s349, %s365
      %p367 = scmp.eq.s32.totalorder %s39, 0
      %p368 = por %p366, %p367
      %s369 = ssub.s32 %s33, %s40
      %p370 = scmp.eq.s32.totalorder %s369, 0
      %s372 = sadd.s32 %s371, 1
      %s373 = scalar_select %p370, %s371, %s372
      %p376 = pneg %p370
      %p377 = scmp.eq.s32.totalorder %s33, 1
      %p378 = por %p376, %p377
      %p379 = scmp.ne.s32.totalorder %s371, %s374
      %p380 = scmp.eq.s32.totalorder %s33, 0
      %p381 = por %p379, %p380
      %p382 = scmp.ne.s32.totalorder %s371, %s374
      %p383 = scmp.eq.s32.totalorder %s38, 1
      %p384 = por %p382, %p383
      %p385 = scmp.ne.s32.totalorder %s374, %s375
      %p386 = scmp.eq.s32.totalorder %s38, 0
      %p387 = por %p385, %p386
      %p388 = scmp.ne.s32.totalorder %s374, %s375
      %p389 = scmp.eq.s32.totalorder %s39, 1
      %p390 = por %p388, %p389
      %p392 = scmp.ne.s32.totalorder %s375, %s391
      %p393 = scmp.eq.s32.totalorder %s39, 0
      %p394 = por %p392, %p393
      %s395 = ssub.s32 %s33, %s40
      %p396 = scmp.eq.s32.totalorder %s395, 0
      %s398 = sadd.s32 %s397, 1
      %s399 = scalar_select %p396, %s397, %s398
      %p402 = pneg %p396
      %p403 = scmp.eq.s32.totalorder %s33, 1
      %p404 = por %p402, %p403
      %p405 = scmp.ne.s32.totalorder %s397, %s400
      %p406 = scmp.eq.s32.totalorder %s33, 0
      %p407 = por %p405, %p406
      %p408 = scmp.ne.s32.totalorder %s397, %s400
      %p409 = scmp.eq.s32.totalorder %s38, 1
      %p410 = por %p408, %p409
      %p411 = scmp.ne.s32.totalorder %s400, %s401
      %p412 = scmp.eq.s32.totalorder %s38, 0
      %p413 = por %p411, %p412
      %p414 = scmp.ne.s32.totalorder %s400, %s401
      %p415 = scmp.eq.s32.totalorder %s39, 1
      %p416 = por %p414, %p415
      %p418 = scmp.ne.s32.totalorder %s401, %s417
      %p419 = scmp.eq.s32.totalorder %s39, 0
      %p420 = por %p418, %p419
      %s421 = ssub.s32 %s33, %s40
      %p422 = scmp.eq.s32.totalorder %s421, 0
      %s424 = sadd.s32 %s423, 1
      %s425 = scalar_select %p422, %s423, %s424
      %p428 = pneg %p422
      %p429 = scmp.eq.s32.totalorder %s33, 1
      %p430 = por %p428, %p429
      %p431 = scmp.ne.s32.totalorder %s423, %s426
      %p432 = scmp.eq.s32.totalorder %s33, 0
      %p433 = por %p431, %p432
      %p434 = scmp.ne.s32.totalorder %s423, %s426
      %p435 = scmp.eq.s32.totalorder %s38, 1
      %p436 = por %p434, %p435
      %p437 = scmp.ne.s32.totalorder %s426, %s427
      %p438 = scmp.eq.s32.totalorder %s38, 0
      %p439 = por %p437, %p438
      %p440 = scmp.ne.s32.totalorder %s426, %s427
      %p441 = scmp.eq.s32.totalorder %s39, 1
      %p442 = por %p440, %p441
      %p444 = scmp.ne.s32.totalorder %s427, %s443
      %p445 = scmp.eq.s32.totalorder %s39, 0
      %p446 = por %p444, %p445
      %s447 = ssub.s32 %s33, %s40
      %p448 = scmp.eq.s32.totalorder %s447, 0
      %s450 = sadd.s32 %s449, 1
      %s451 = scalar_select %p448, %s449, %s450
      %p454 = pneg %p448
      %p455 = scmp.eq.s32.totalorder %s33, 1
      %p456 = por %p454, %p455
      %p457 = scmp.ne.s32.totalorder %s449, %s452
      %p458 = scmp.eq.s32.totalorder %s33, 0
      %p459 = por %p457, %p458
      %p460 = scmp.ne.s32.totalorder %s449, %s452
      %p461 = scmp.eq.s32.totalorder %s38, 1
      %p462 = por %p460, %p461
      %p463 = scmp.ne.s32.totalorder %s452, %s453
      %p464 = scmp.eq.s32.totalorder %s38, 0
      %p465 = por %p463, %p464
      %p466 = scmp.ne.s32.totalorder %s452, %s453
      %p467 = scmp.eq.s32.totalorder %s39, 1
      %p468 = por %p466, %p467
      %p470 = scmp.ne.s32.totalorder %s453, %s469
      %p471 = scmp.eq.s32.totalorder %s39, 0
      %p472 = por %p470, %p471
      %s473 = ssub.s32 %s33, %s40
      %p474 = scmp.eq.s32.totalorder %s473, 0
      %s476 = sadd.s32 %s475, 1
      %s477 = scalar_select %p474, %s475, %s476
      %p480 = pneg %p474
      %p481 = scmp.eq.s32.totalorder %s33, 1
      %p482 = por %p480, %p481
      %p483 = scmp.ne.s32.totalorder %s475, %s478
      %p484 = scmp.eq.s32.totalorder %s33, 0
      %p485 = por %p483, %p484
      %p486 = scmp.ne.s32.totalorder %s475, %s478
      %p487 = scmp.eq.s32.totalorder %s38, 1
      %p488 = por %p486, %p487
      %p489 = scmp.ne.s32.totalorder %s478, %s479
      %p490 = scmp.eq.s32.totalorder %s38, 0
      %p491 = por %p489, %p490
      %p492 = scmp.ne.s32.totalorder %s478, %s479
      %p493 = scmp.eq.s32.totalorder %s39, 1
      %p494 = por %p492, %p493
      %p496 = scmp.ne.s32.totalorder %s479, %s495
      %p497 = scmp.eq.s32.totalorder %s39, 0
      %p498 = por %p496, %p497
      %s500 = sadd.s32 %s499, 1
      %p503 = scmp.eq.s32.totalorder %s33, 1
      %p504 = scmp.ne.s32.totalorder %s499, %s501
      %p505 = scmp.eq.s32.totalorder %s33, 0
      %p506 = por %p504, %p505
      %p507 = scmp.ne.s32.totalorder %s499, %s501
      %p508 = scmp.eq.s32.totalorder %s38, 1
      %p509 = por %p507, %p508
      %p510 = scmp.ne.s32.totalorder %s501, %s502
      %p511 = scmp.eq.s32.totalorder %s38, 0
      %p512 = por %p510, %p511
      %p513 = scmp.ne.s32.totalorder %s501, %s502
      %p514 = scmp.eq.s32.totalorder %s39, 1
      %p515 = por %p513, %p514
      %p517 = scmp.ne.s32.totalorder %s502, %s516
      %p518 = scmp.eq.s32.totalorder %s39, 0
      %p519 = por %p517, %p518
      %p520 = scmp.le.s32.totalorder 1, %s33
      %p521 = scmp.lt.s32.totalorder %s33, 3
      %p522 = pnand %p520, %p521
      %p523 = pneg %p522
      // Predicated region
      $region9: #{transformer_pallas.1} parent=5 // pred_check
        _
      $region10: #{transformer_pallas.1} parent=5 // pred_check_branch
        %525 = sbr.rel (%p522) target = $region12
      $region11: #{transformer_pallas.1} parent=5 // pred_region
        %s526 = ssub.s32 %s33, 1
        // Predicated region
        $region13: #{transformer_pallas.1} parent=11 // pred_check
          %p527 = pneg %p54
        $region14: #{transformer_pallas.1} parent=11 // pred_check_branch
          %529 = sbr.rel (%p527) target = $region16
        $region15: #{transformer_pallas.1} parent=11 // pred_region
          _
        $region16: #{transformer_pallas.1} parent=11 // pred_fallthru
          _
        // Predicated region
        $region17: #{transformer_pallas.1} parent=11 // pred_check
          %p530 = pneg %p75
        $region18: #{transformer_pallas.1} parent=11 // pred_check_branch
          %532 = sbr.rel (%p530) target = $region20
        $region19: #{transformer_pallas.1} parent=11 // pred_region
          _
        $region20: #{transformer_pallas.1} parent=11 // pred_fallthru
          _
      $region12: #{transformer_pallas.1} parent=5 // pred_fallthru
        _
      %p533 = scmp.lt.s32.totalorder %s33, 2
      // Predicated region
      $region21: #{transformer_pallas.1} parent=5 // pred_check
        %p534 = pneg %p533
      $region22: #{transformer_pallas.1} parent=5 // pred_check_branch
        %536 = sbr.rel (%p534) target = $region24
      $region23: #{transformer_pallas.1} parent=5 // pred_region
        // Predicated region
        $region25: #{transformer_pallas.1} parent=23 // pred_check
          %p537 = pneg %p95
        $region26: #{transformer_pallas.1} parent=23 // pred_check_branch
          %539 = sbr.rel (%p537) target = $region28
        $region27: #{transformer_pallas.1} parent=23 // pred_region
          %p540 = scmp.lt.s32.totalorder %s33, 1
          %s541 = scalar_select %p540, %s33, 1
          %s542 = scalar_lea.vmem %s2, %s541
        $region28: #{transformer_pallas.1} parent=23 // pred_fallthru
          _
        // Predicated region
        $region29: #{transformer_pallas.1} parent=23 // pred_check
          %p543 = pneg %p121
        $region30: #{transformer_pallas.1} parent=23 // pred_check_branch
          %545 = sbr.rel (%p543) target = $region32
        $region31: #{transformer_pallas.1} parent=23 // pred_region
          %p546 = scmp.lt.s32.totalorder %s33, 1
          %s547 = scalar_select %p546, %s33, 1
          %s548 = scalar_lea.vmem %s3, %s547
        $region32: #{transformer_pallas.1} parent=23 // pred_fallthru
          _
        // Predicated region
        $region33: #{transformer_pallas.1} parent=23 // pred_check
          %p549 = pneg %p147
        $region34: #{transformer_pallas.1} parent=23 // pred_check_branch
          %551 = sbr.rel (%p549) target = $region36
        $region35: #{transformer_pallas.1} parent=23 // pred_region
          %p552 = scmp.lt.s32.totalorder %s33, 1
          %s553 = scalar_select %p552, %s33, 1
          %s554 = smul.addr %s553, 16
          %s555 = smul.addr %s554, 4
          %s556 = scalar_lea.vmem %s4, %s555
        $region36: #{transformer_pallas.1} parent=23 // pred_fallthru
          _
        // Predicated region
        $region37: #{transformer_pallas.1} parent=23 // pred_check
          %p557 = pneg %p173
        $region38: #{transformer_pallas.1} parent=23 // pred_check_branch
          %559 = sbr.rel (%p557) target = $region40
        $region39: #{transformer_pallas.1} parent=23 // pred_region
          %s560 = sand.u32 %s163, 1
          %s561 = scalar_lea.sflag [#allocation3], %s560
          %s562 = sand.u32 %s163, 1
          %s563 = smul.addr %s562, 64
          %s564 = scalar_lea.vmem [#allocation2], %s563
          %s566 = ssub.s32 1024, 1024
          %567 = vsyncadd %s561, %s566
          %s568 = smul.addr %s33, 16
          %s569 = smul.addr %s568, 64
          %s570 = scalar_lea.hbm %s5, %s569
          %s571 = sshll.u32 %s564, 4
          %s572 = int_to_ptr.vmem [resolvable:$true] %s571
          %577 = dma.hbm_to_vmem [thread:$0]  %s570, 1024, %s572, %s561, 64, 64, 4
        $region40: #{transformer_pallas.1} parent=23 // pred_fallthru
          _
        // Predicated region
        $region41: #{transformer_pallas.1} parent=23 // pred_check
          %p578 = pneg %p199
        $region42: #{transformer_pallas.1} parent=23 // pred_check_branch
          %580 = sbr.rel (%p578) target = $region44
        $region43: #{transformer_pallas.1} parent=23 // pred_region
          %s581 = sand.u32 %s33, 1
          %s582 = scalar_lea.sflag [#allocation5], %s581
          %s583 = sand.u32 %s189, 1
          %s584 = smul.addr %s583, 64
          %s585 = scalar_lea.vmem [#allocation4], %s584
          %s587 = ssub.s32 1024, 1024
          %588 = vsyncadd %s582, %s587
          %s589 = smul.addr %s33, 16
          %s590 = smul.addr %s589, 64
          %s591 = scalar_lea.hbm %s6, %s590
          %s592 = sshll.u32 %s585, 4
          %s593 = int_to_ptr.vmem [resolvable:$true] %s592
          %598 = dma.hbm_to_vmem [thread:$0]  %s591, 1024, %s593, %s582, 64, 64, 4
        $region44: #{transformer_pallas.1} parent=23 // pred_fallthru
          _
        // Predicated region
        $region45: #{transformer_pallas.1} parent=23 // pred_check
          %p599 = pneg %p225
        $region46: #{transformer_pallas.1} parent=23 // pred_check_branch
          %601 = sbr.rel (%p599) target = $region48
        $region47: #{transformer_pallas.1} parent=23 // pred_region
          %p602 = scmp.lt.s32.totalorder %s33, 1
          %s603 = scalar_select %p602, %s33, 1
          %s604 = scalar_lea.vmem %s7, %s603
        $region48: #{transformer_pallas.1} parent=23 // pred_fallthru
          _
        // Predicated region
        $region49: #{transformer_pallas.1} parent=23 // pred_check
          %p605 = pneg %p251
        $region50: #{transformer_pallas.1} parent=23 // pred_check_branch
          %607 = sbr.rel (%p605) target = $region52
        $region51: #{transformer_pallas.1} parent=23 // pred_region
          %p608 = scmp.lt.s32.totalorder %s33, 1
          %s609 = scalar_select %p608, %s33, 1
          %s610 = scalar_lea.vmem %s8, %s609
        $region52: #{transformer_pallas.1} parent=23 // pred_fallthru
          _
        // Predicated region
        $region53: #{transformer_pallas.1} parent=23 // pred_check
          %p611 = pneg %p277
        $region54: #{transformer_pallas.1} parent=23 // pred_check_branch
          %613 = sbr.rel (%p611) target = $region56
        $region55: #{transformer_pallas.1} parent=23 // pred_region
          %p614 = scmp.lt.s32.totalorder %s33, 1
          %s615 = scalar_select %p614, %s33, 1
          %s616 = scalar_lea.vmem %s9, %s615
        $region56: #{transformer_pallas.1} parent=23 // pred_fallthru
          _
        // Predicated region
        $region57: #{transformer_pallas.1} parent=23 // pred_check
          %p617 = pneg %p303
        $region58: #{transformer_pallas.1} parent=23 // pred_check_branch
          %619 = sbr.rel (%p617) target = $region60
        $region59: #{transformer_pallas.1} parent=23 // pred_region
          %s620 = sand.u32 %s33, 1
          %s621 = scalar_lea.sflag [#allocation5], %s620
          %s622 = sand.u32 %s293, 1
          %s623 = smul.addr %s622, 64
          %s624 = scalar_lea.vmem [#allocation6], %s623
          %s626 = ssub.s32 1024, 1024
          %627 = vsyncadd %s621, %s626
          %s628 = smul.addr %s33, 16
          %s629 = smul.addr %s628, 64
          %s630 = scalar_lea.hbm %s10, %s629
          %s631 = sshll.u32 %s624, 4
          %s632 = int_to_ptr.vmem [resolvable:$true] %s631
          %637 = dma.hbm_to_vmem [thread:$0]  %s630, 1024, %s632, %s621, 64, 64, 4
        $region60: #{transformer_pallas.1} parent=23 // pred_fallthru
          _
        // Predicated region
        $region61: #{transformer_pallas.1} parent=23 // pred_check
          %p638 = pneg %p329
        $region62: #{transformer_pallas.1} parent=23 // pred_check_branch
          %640 = sbr.rel (%p638) target = $region64
        $region63: #{transformer_pallas.1} parent=23 // pred_region
          %p641 = scmp.lt.s32.totalorder %s33, 1
          %s642 = scalar_select %p641, %s33, 1
          %s643 = scalar_lea.vmem %s11, %s642
        $region64: #{transformer_pallas.1} parent=23 // pred_fallthru
          _
        // Predicated region
        $region65: #{transformer_pallas.1} parent=23 // pred_check
          %p644 = pneg %p355
        $region66: #{transformer_pallas.1} parent=23 // pred_check_branch
          %646 = sbr.rel (%p644) target = $region68
        $region67: #{transformer_pallas.1} parent=23 // pred_region
          %p647 = scmp.lt.s32.totalorder %s33, 1
          %s648 = scalar_select %p647, %s33, 1
          %s649 = scalar_lea.vmem %s12, %s648
        $region68: #{transformer_pallas.1} parent=23 // pred_fallthru
          _
        // Predicated region
        $region69: #{transformer_pallas.1} parent=23 // pred_check
          %p650 = pneg %p381
        $region70: #{transformer_pallas.1} parent=23 // pred_check_branch
          %652 = sbr.rel (%p650) target = $region72
        $region71: #{transformer_pallas.1} parent=23 // pred_region
          %p653 = scmp.lt.s32.totalorder %s33, 1
          %s654 = scalar_select %p653, %s33, 1
          %s655 = scalar_lea.vmem %s13, %s654
        $region72: #{transformer_pallas.1} parent=23 // pred_fallthru
          _
        // Predicated region
        $region73: #{transformer_pallas.1} parent=23 // pred_check
          %p656 = pneg %p407
        $region74: #{transformer_pallas.1} parent=23 // pred_check_branch
          %658 = sbr.rel (%p656) target = $region76
        $region75: #{transformer_pallas.1} parent=23 // pred_region
          %s659 = sand.u32 %s33, 1
          %s660 = scalar_lea.sflag [#allocation8], %s659
          %s661 = sand.u32 %s397, 1
          %s662 = smul.addr %s661, 64
          %s663 = scalar_lea.vmem [#allocation7], %s662
          %s665 = ssub.s32 1024, 1024
          %666 = vsyncadd %s660, %s665
          %s667 = smul.addr %s33, 16
          %s668 = smul.addr %s667, 64
          %s669 = scalar_lea.hbm %s14, %s668
          %s670 = sshll.u32 %s663, 4
          %s671 = int_to_ptr.vmem [resolvable:$true] %s670
          %676 = dma.hbm_to_vmem [thread:$0]  %s669, 1024, %s671, %s660, 64, 64, 4
        $region76: #{transformer_pallas.1} parent=23 // pred_fallthru
          _
        // Predicated region
        $region77: #{transformer_pallas.1} parent=23 // pred_check
          %p677 = pneg %p433
        $region78: #{transformer_pallas.1} parent=23 // pred_check_branch
          %679 = sbr.rel (%p677) target = $region80
        $region79: #{transformer_pallas.1} parent=23 // pred_region
          %p680 = scmp.lt.s32.totalorder %s33, 1
          %s681 = scalar_select %p680, %s33, 1
          %s682 = scalar_lea.vmem %s15, %s681
        $region80: #{transformer_pallas.1} parent=23 // pred_fallthru
          _
        // Predicated region
        $region81: #{transformer_pallas.1} parent=23 // pred_check
          %p683 = pneg %p459
        $region82: #{transformer_pallas.1} parent=23 // pred_check_branch
          %685 = sbr.rel (%p683) target = $region84
        $region83: #{transformer_pallas.1} parent=23 // pred_region
          %s686 = sand.u32 %s33, 1
          %s687 = scalar_lea.sflag [#allocation8], %s686
          %s688 = sand.u32 %s449, 1
          %s689 = smul.addr %s688, 64
          %s690 = scalar_lea.vmem [#allocation9], %s689
          %s692 = ssub.s32 1024, 1024
          %693 = vsyncadd %s687, %s692
          %s694 = smul.addr %s33, 16
          %s695 = smul.addr %s694, 64
          %s696 = scalar_lea.hbm %s16, %s695
          %s697 = sshll.u32 %s690, 4
          %s698 = int_to_ptr.vmem [resolvable:$true] %s697
          %703 = dma.hbm_to_vmem [thread:$0]  %s696, 1024, %s698, %s687, 64, 64, 4
        $region84: #{transformer_pallas.1} parent=23 // pred_fallthru
          _
        // Predicated region
        $region85: #{transformer_pallas.1} parent=23 // pred_check
          %p704 = pneg %p485
        $region86: #{transformer_pallas.1} parent=23 // pred_check_branch
          %706 = sbr.rel (%p704) target = $region88
        $region87: #{transformer_pallas.1} parent=23 // pred_region
          %p707 = scmp.lt.s32.totalorder %s33, 1
          %s708 = scalar_select %p707, %s33, 1
          %s709 = scalar_lea.vmem %s17, %s708
        $region88: #{transformer_pallas.1} parent=23 // pred_fallthru
          _
      $region24: #{transformer_pallas.1} parent=5 // pred_fallthru
        _
      %p710 = scmp.le.s32.totalorder 1, %s33
      %p711 = scmp.lt.s32.totalorder %s33, 3
      %p712 = pnand %p710, %p711
      %p713 = pneg %p712
      // Predicated region
      $region89: #{transformer_pallas.1} parent=5 // pred_check
        _
      $region90: #{transformer_pallas.1} parent=5 // pred_check_branch
        %715 = sbr.rel (%p712) target = $region92
      $region91: #{transformer_pallas.1} parent=5 // pred_region
        %s716 = ssub.s32 %s33, 1
        %s717 = sand.u32 %s166, 1
        %s718 = scalar_lea.sflag [#allocation3], %s717
        %s719 = sand.u32 %s166, 1
        %s720 = smul.addr %s719, 64
        %s721 = scalar_lea.vmem [#allocation2], %s720
        // Predicated region
        $region93: #{transformer_pallas.1} parent=91 // pred_check
          %p722 = pneg %p179
        $region94: #{transformer_pallas.1} parent=91 // pred_check_branch
          %724 = sbr.rel (%p722) target = $region96
        $region95: #{transformer_pallas.1} parent=91 // pred_region
          %725 = dma.done %s718, 1024
        $region96: #{transformer_pallas.1} parent=91 // pred_fallthru
          _
        %s726 = sand.u32 %s38, 1
        %s727 = scalar_lea.sflag [#allocation5], %s726
        %s728 = sand.u32 %s192, 1
        %s729 = smul.addr %s728, 64
        %s730 = scalar_lea.vmem [#allocation4], %s729
        // Predicated region
        $region97: #{transformer_pallas.1} parent=91 // pred_check
          %p731 = pneg %p205
        $region98: #{transformer_pallas.1} parent=91 // pred_check_branch
          %733 = sbr.rel (%p731) target = $region100
        $region99: #{transformer_pallas.1} parent=91 // pred_region
          %734 = dma.done %s727, 1024
        $region100: #{transformer_pallas.1} parent=91 // pred_fallthru
          _
        %s735 = sand.u32 %s38, 1
        %s736 = scalar_lea.sflag [#allocation5], %s735
        %s737 = sand.u32 %s296, 1
        %s738 = smul.addr %s737, 64
        %s739 = scalar_lea.vmem [#allocation6], %s738
        // Predicated region
        $region101: #{transformer_pallas.1} parent=91 // pred_check
          %p740 = pneg %p309
        $region102: #{transformer_pallas.1} parent=91 // pred_check_branch
          %742 = sbr.rel (%p740) target = $region104
        $region103: #{transformer_pallas.1} parent=91 // pred_region
          %743 = dma.done %s736, 1024
        $region104: #{transformer_pallas.1} parent=91 // pred_fallthru
          _
        %s744 = sand.u32 %s38, 1
        %s745 = scalar_lea.sflag [#allocation8], %s744
        %s746 = sand.u32 %s400, 1
        %s747 = smul.addr %s746, 64
        %s748 = scalar_lea.vmem [#allocation7], %s747
        // Predicated region
        $region105: #{transformer_pallas.1} parent=91 // pred_check
          %p749 = pneg %p413
        $region106: #{transformer_pallas.1} parent=91 // pred_check_branch
          %751 = sbr.rel (%p749) target = $region108
        $region107: #{transformer_pallas.1} parent=91 // pred_region
          %752 = dma.done %s745, 1024
        $region108: #{transformer_pallas.1} parent=91 // pred_fallthru
          _
        %s753 = sand.u32 %s38, 1
        %s754 = scalar_lea.sflag [#allocation8], %s753
        %s755 = sand.u32 %s452, 1
        %s756 = smul.addr %s755, 64
        %s757 = scalar_lea.vmem [#allocation9], %s756
        // Predicated region
        $region109: #{transformer_pallas.1} parent=91 // pred_check
          %p758 = pneg %p465
        $region110: #{transformer_pallas.1} parent=91 // pred_check_branch
          %760 = sbr.rel (%p758) target = $region112
        $region111: #{transformer_pallas.1} parent=91 // pred_region
          %761 = dma.done %s754, 1024
        $region112: #{transformer_pallas.1} parent=91 // pred_fallthru
          _
        %p762 = pneg %p54
        %p763 = pneg %p51
        %p764 = pneg %p75
        %p765 = pneg %p72
        %p766 = scmp.lt.s32.totalorder %s38, 1
        %s767 = scalar_select %p766, %s38, 1
        %s768 = scalar_lea.vmem %s2, %s767
        %p769 = pneg %p101
        %p770 = pneg %p98
        %p771 = scmp.lt.s32.totalorder %s38, 1
        %s772 = scalar_select %p771, %s38, 1
        %s773 = scalar_lea.vmem %s3, %s772
        %p774 = pneg %p127
        %p775 = pneg %p124
        %p776 = scmp.lt.s32.totalorder %s38, 1
        %s777 = scalar_select %p776, %s38, 1
        %s778 = smul.addr %s777, 16
        %s779 = smul.addr %s778, 4
        %s780 = scalar_lea.vmem %s4, %s779
        %p781 = pneg %p153
        %p782 = pneg %p150
        %s783 = sand.u32 %s166, 1
        %s784 = scalar_lea.sflag [#allocation3], %s783
        %s785 = sand.u32 %s166, 1
        %s786 = smul.addr %s785, 64
        %s787 = scalar_lea.vmem [#allocation2], %s786
        %p788 = pneg %p179
        %p789 = pneg %p176
        %s790 = sand.u32 %s38, 1
        %s791 = scalar_lea.sflag [#allocation5], %s790
        %s792 = sand.u32 %s192, 1
        %s793 = smul.addr %s792, 64
        %s794 = scalar_lea.vmem [#allocation4], %s793
        %p795 = pneg %p205
        %p796 = pneg %p202
        %p797 = scmp.lt.s32.totalorder %s38, 1
        %s798 = scalar_select %p797, %s38, 1
        %s799 = scalar_lea.vmem %s7, %s798
        %p800 = pneg %p231
        %p801 = pneg %p228
        %p802 = scmp.lt.s32.totalorder %s38, 1
        %s803 = scalar_select %p802, %s38, 1
        %s804 = scalar_lea.vmem %s8, %s803
        %p805 = pneg %p257
        %p806 = pneg %p254
        %p807 = scmp.lt.s32.totalorder %s38, 1
        %s808 = scalar_select %p807, %s38, 1
        %s809 = scalar_lea.vmem %s9, %s808
        %p810 = pneg %p283
        %p811 = pneg %p280
        %s812 = sand.u32 %s38, 1
        %s813 = scalar_lea.sflag [#allocation5], %s812
        %s814 = sand.u32 %s296, 1
        %s815 = smul.addr %s814, 64
        %s816 = scalar_lea.vmem [#allocation6], %s815
        %p817 = pneg %p309
        %p818 = pneg %p306
        %p819 = scmp.lt.s32.totalorder %s38, 1
        %s820 = scalar_select %p819, %s38, 1
        %s821 = scalar_lea.vmem %s11, %s820
        %p822 = pneg %p335
        %p823 = pneg %p332
        %p824 = scmp.lt.s32.totalorder %s38, 1
        %s825 = scalar_select %p824, %s38, 1
        %s826 = scalar_lea.vmem %s12, %s825
        %p827 = pneg %p361
        %p828 = pneg %p358
        %p829 = scmp.lt.s32.totalorder %s38, 1
        %s830 = scalar_select %p829, %s38, 1
        %s831 = scalar_lea.vmem %s13, %s830
        %p832 = pneg %p387
        %p833 = pneg %p384
        %s834 = sand.u32 %s38, 1
        %s835 = scalar_lea.sflag [#allocation8], %s834
        %s836 = sand.u32 %s400, 1
        %s837 = smul.addr %s836, 64
        %s838 = scalar_lea.vmem [#allocation7], %s837
        %p839 = pneg %p413
        %p840 = pneg %p410
        %p841 = scmp.lt.s32.totalorder %s38, 1
        %s842 = scalar_select %p841, %s38, 1
        %s843 = scalar_lea.vmem %s15, %s842
        %p844 = pneg %p439
        %p845 = pneg %p436
        %s846 = sand.u32 %s38, 1
        %s847 = scalar_lea.sflag [#allocation8], %s846
        %s848 = sand.u32 %s452, 1
        %s849 = smul.addr %s848, 64
        %s850 = scalar_lea.vmem [#allocation9], %s849
        %p851 = pneg %p465
        %p852 = pneg %p462
        %p853 = scmp.lt.s32.totalorder %s38, 1
        %s854 = scalar_select %p853, %s38, 1
        %s855 = scalar_lea.vmem %s17, %s854
        %p856 = pneg %p491
        %p857 = pneg %p488
        %p858 = pneg %p512
        %p859 = pneg %p509
        %p860 = scmp.lt.s32.totalorder %s38, 1
        %s861 = scalar_select %p860, %s38, 1
        %s862 = scalar_lea.vmem %s2, %s861
        %p863 = scmp.lt.s32.totalorder %s38, 1
        %s864 = scalar_select %p863, %s38, 1
        %s865 = scalar_lea.vmem %s3, %s864
        %p866 = scmp.lt.s32.totalorder %s38, 1
        %s867 = scalar_select %p866, %s38, 1
        %s868 = smul.addr %s867, 16
        %s869 = smul.addr %s868, 4
        %s870 = scalar_lea.vmem %s4, %s869
        %p871 = scmp.lt.s32.totalorder %s38, 1
        %s872 = scalar_select %p871, %s38, 1
        %s873 = scalar_lea.vmem %s7, %s872
        %p874 = scmp.lt.s32.totalorder %s38, 1
        %s875 = scalar_select %p874, %s38, 1
        %s876 = scalar_lea.vmem %s8, %s875
        %p877 = scmp.lt.s32.totalorder %s38, 1
        %s878 = scalar_select %p877, %s38, 1
        %s879 = scalar_lea.vmem %s9, %s878
        %p880 = scmp.lt.s32.totalorder %s38, 1
        %s881 = scalar_select %p880, %s38, 1
        %s882 = scalar_lea.vmem %s11, %s881
        %p883 = scmp.lt.s32.totalorder %s38, 1
        %s884 = scalar_select %p883, %s38, 1
        %s885 = scalar_lea.vmem %s12, %s884
        %p886 = scmp.lt.s32.totalorder %s38, 1
        %s887 = scalar_select %p886, %s38, 1
        %s888 = scalar_lea.vmem %s13, %s887
        %p889 = scmp.lt.s32.totalorder %s38, 1
        %s890 = scalar_select %p889, %s38, 1
        %s891 = scalar_lea.vmem %s15, %s890
        %p892 = scmp.lt.s32.totalorder %s38, 1
        %s893 = scalar_select %p892, %s38, 1
        %s894 = scalar_lea.vmem %s17, %s893
        %p896 = scmp.eq.s32.totalorder %s38, 0
        // Predicated region
        $region113: #{transformer_pallas.1} parent=91 // pred_check
          %p897 = pneg %p896
        $region114: #{transformer_pallas.1} parent=91 // pred_check_branch
          %899 = sbr.rel (%p897) target = $region116
        $region115: #{transformer_pallas.1} parent=91 // pred_region
          %v900 = vld [vmem:[%s0] sm:$0xff]
          %v901 = vld [vmem:[%s0 + $0x8] sm:$0xff]
          %v902 = vld [vmem:[%s0 + $0x10] sm:$0xff]
          %v903 = vld [vmem:[%s0 + $0x18] sm:$0xff]
          %904 = vst [vmem:[%s18] sm:$0xff] %v900
          %905 = vst [vmem:[%s18 + $0x8] sm:$0xff] %v901
          %906 = vst [vmem:[%s18 + $0x10] sm:$0xff] %v902
          %907 = vst [vmem:[%s18 + $0x18] sm:$0xff] %v903
        $region116: #{transformer_pallas.1} parent=91 // pred_fallthru
          _
        %v908 = vld [vmem:[%s18] sm:$0xff]
        %v909 = vld [vmem:[%s18 + $0x8] sm:$0xff]
        %v910 = vld [vmem:[%s18 + $0x10] sm:$0xff]
        %v911 = vld [vmem:[%s18 + $0x18] sm:$0xff]
        %v912 = vlaneseq
        %v913 = vand.u32 %v912, 127
        %vm914 = vcmp.lt.s32.totalorder %v913, 32
        %v915 = vld [vmem:[%s862] sm:$0x1]
        %v916 = vld [vmem:[%s865] sm:$0x1]
        %917 = vadd.xlane.f32.xlu0 %v908
        %v918 = vpop.xlane.xlu0 %917
        %919 = vadd.xlane.f32.xlu0 %v909
        %v920 = vpop.xlane.xlu0 %919
        %921 = vadd.xlane.f32.xlu0 %v910
        %v922 = vpop.xlane.xlu0 %921
        %923 = vadd.xlane.f32.xlu0 %v911
        %v924 = vpop.xlane.xlu0 %923
        %v925 = vmul.f32 %v918, 0.03125
        %v926 = vmul.f32 %v920, 0.03125
        %v927 = vmul.f32 %v922, 0.03125
        %v928 = vmul.f32 %v924, 0.03125
        %v929 = vsub.f32 %v908, %v925
        %v930 = vsub.f32 %v909, %v926
        %v931 = vsub.f32 %v910, %v927
        %v932 = vsub.f32 %v911, %v928
        %v933 = vmul.f32 %v929, %v929
        %v934 = vmul.f32 %v930, %v930
        %v935 = vmul.f32 %v931, %v931
        %v936 = vmul.f32 %v932, %v932
        %v937 = vsel %vm914, 1, 0
        %vm938 = vcmp.eq.s32.totalorder %v937, 1
        %v939 = vsel %vm938, %v933, 0.0
        %v940 = vsel %vm938, %v934, 0.0
        %v941 = vsel %vm938, %v935, 0.0
        %v942 = vsel %vm938, %v936, 0.0
        %943 = vadd.xlane.f32.xlu0 %v939
        %v944 = vpop.xlane.xlu0 %943
        %945 = vadd.xlane.f32.xlu0 %v940
        %v946 = vpop.xlane.xlu0 %945
        %947 = vadd.xlane.f32.xlu0 %v941
        %v948 = vpop.xlane.xlu0 %947
        %949 = vadd.xlane.f32.xlu0 %v942
        %v950 = vpop.xlane.xlu0 %949
        %v951 = vmul.f32 %v944, 0.03125
        %v952 = vmul.f32 %v946, 0.03125
        %v953 = vmul.f32 %v948, 0.03125
        %v954 = vmul.f32 %v950, 0.03125
        %v955 = vadd.f32 %v951, 1e-05
        %v956 = vadd.f32 %v952, 1e-05
        %v957 = vadd.f32 %v953, 1e-05
        %v958 = vadd.f32 %v954, 1e-05
        %v959 = vrsqrt.pop %v955
        %v960 = vrsqrt.pop %v956
        %v961 = vrsqrt.pop %v957
        %v962 = vrsqrt.pop %v958
        %v963 = vmul.f32 %v929, %v959
        %v964 = vmul.f32 %v930, %v960
        %v965 = vmul.f32 %v931, %v961
        %v966 = vmul.f32 %v932, %v962
        %v968 = vlaneseq
        %v969 = vshrl.u32 %v968, 7
        %v970 = vsub.s32 0, %v969
        %v971 = vrot.slane %v915, %v970
        %v973 = vmul.f32 %v963, %v971
        %v974 = vmul.f32 %v964, %v971
        %v975 = vmul.f32 %v965, %v971
        %v976 = vmul.f32 %v966, %v971
        %v978 = vlaneseq
        %v979 = vshrl.u32 %v978, 7
        %v980 = vsub.s32 0, %v979
        %v981 = vrot.slane %v916, %v980
        %v983 = vadd.f32 %v973, %v981
        %v984 = vadd.f32 %v974, %v981
        %v985 = vadd.f32 %v975, %v981
        %v986 = vadd.f32 %v976, %v981
        %v987 = vpack.c.bf16 %v984, %v983
        %v988 = vpack.c.bf16 %v986, %v985
        %v989 = vld [vmem:[%s870] sm:$0xf]
        %v990 = vld [vmem:[%s870 + $0x4] sm:$0xf]
        %v991 = vld [vmem:[%s870 + $0x8] sm:$0xf]
        %v992 = vld [vmem:[%s870 + $0xc] sm:$0xf]
        %v993 = vld [vmem:[%s870 + $0x10] sm:$0xf]
        %v994 = vld [vmem:[%s870 + $0x14] sm:$0xf]
        %v995 = vld [vmem:[%s870 + $0x18] sm:$0xf]
        %v996 = vld [vmem:[%s870 + $0x1c] sm:$0xf]
        %v997 = vld [vmem:[%s870 + $0x20] sm:$0xf]
        %v998 = vld [vmem:[%s870 + $0x24] sm:$0xf]
        %v999 = vld [vmem:[%s870 + $0x28] sm:$0xf]
        %v1000 = vld [vmem:[%s870 + $0x2c] sm:$0xf]
        %v1001 = vld [vmem:[%s870 + $0x30] sm:$0xf]
        %v1002 = vld [vmem:[%s870 + $0x34] sm:$0xf]
        %v1003 = vld [vmem:[%s870 + $0x38] sm:$0xf]
        %v1004 = vld [vmem:[%s870 + $0x3c] sm:$0xf]
        %v1005 = vld [vmem:[%s873] sm:$0x1]
        %v1007 = vlaneseq
        %v1008 = vshrl.u32 %v1007, 7
        %v1009 = vsub.s32 0, %v1008
        %v1010 = vrot.slane %v1005, %v1009
        %v1028 = vunpack.c.l.b16 %v989
        %v1029 = vunpack.c.l.b16 %v990
        %v1030 = vunpack.c.l.b16 %v991
        %v1031 = vunpack.c.l.b16 %v992
        %v1032 = vunpack.c.l.b16 %v993
        %v1033 = vunpack.c.l.b16 %v994
        %v1034 = vunpack.c.l.b16 %v995
        %v1035 = vunpack.c.l.b16 %v996
        %v1036 = vunpack.c.l.b16 %v997
        %v1037 = vunpack.c.l.b16 %v998
        %v1038 = vunpack.c.l.b16 %v999
        %v1039 = vunpack.c.l.b16 %v1000
        %v1040 = vunpack.c.l.b16 %v1001
        %v1041 = vunpack.c.l.b16 %v1002
        %v1042 = vunpack.c.l.b16 %v1003
        %v1043 = vunpack.c.l.b16 %v1004
        %v1044 = vpack.c.b16 %v1029, %v1028
        %v1045 = vpack.c.b16 %v1031, %v1030
        %v1046 = vpack.c.b16 %v1033, %v1032
        %v1047 = vpack.c.b16 %v1035, %v1034
        %v1048 = vpack.c.b16 %v1037, %v1036
        %v1049 = vpack.c.b16 %v1039, %v1038
        %v1050 = vpack.c.b16 %v1041, %v1040
        %v1051 = vpack.c.b16 %v1043, %v1042
        %1060 = vmatprep.subr.bf16.mxu0 0
        %1061 = vmatpush1.bf16.msra.mxu0 %v1044
        %1062 = vmatprep.subr.bf16.mxu0 0
        %1063 = vmatpush1.bf16.msra.mxu0 %v1045
        %1064 = vmatprep.subr.bf16.mxu0 0
        %1065 = vmatpush1.bf16.msra.mxu0 %v1046
        %1066 = vmatprep.subr.bf16.mxu0 0
        %1067 = vmatpush1.bf16.msra.mxu0 %v1047
        %1068 = vmatprep.subr.bf16.mxu0 0
        %1069 = vmatpush1.bf16.msra.mxu0 %v1048
        %1070 = vmatprep.subr.bf16.mxu0 0
        %1071 = vmatpush1.bf16.msra.mxu0 %v1049
        %1072 = vmatprep.subr.bf16.mxu0 0
        %1073 = vmatpush1.bf16.msra.mxu0 %v1050
        %1074 = vmatprep.subr.bf16.mxu0 0
        %1075 = vmatpush1.bf16.msra.mxu0 %v1051
        %1076 = vmatprep.subr.bf16.mxu0 0
        %1077 = vmatpush1.bf16.msra.mxu0 0
        %1078 = vmatprep.subr.bf16.mxu0 0
        %1079 = vmatpush1.bf16.msra.mxu0 0
        %1080 = vmatprep.subr.bf16.mxu0 0
        %1081 = vmatpush1.bf16.msra.mxu0 0
        %1082 = vmatprep.subr.bf16.mxu0 0
        %1083 = vmatpush1.bf16.msra.mxu0 0
        %1084 = vmatprep.subr.bf16.mxu0 0
        %1085 = vmatpush1.bf16.msra.mxu0 0
        %1086 = vmatprep.subr.bf16.mxu0 0
        %1087 = vmatpush1.bf16.msra.mxu0 0
        %1088 = vmatprep.subr.bf16.mxu0 0
        %1089 = vmatpush1.bf16.msra.mxu0 0
        %1090 = vmatprep.subr.bf16.mxu0 0
        %1091 = vmatpush1.bf16.msra.mxu0 0
        %1092 = vmatprep.mubr.bf16.mxu0 0
        %1093 = vmatmul.mubr.bf16.gmra.mrb[0].mxu0 %v987
        %v1094 = vpop.f32.mrb[0].mxu0
        %v1095 = vadd.f32 %v1010, %v1094
        %v1096 = vpop.f32.mrb[0].mxu0
        %v1097 = vpop.f32.mrb[0].mxu0
        %v1098 = vadd.f32 %v1010, %v1097
        %v1099 = vpop.f32.mrb[0].mxu0
        %1100 = vmatprep.mubr.bf16.mxu0 0
        %1101 = vmatmul.mubr.bf16.gmra.mrb[0].mxu0 %v988
        %v1102 = vpop.f32.mrb[0].mxu0
        %v1103 = vadd.f32 %v1010, %v1102
        %v1104 = vpop.f32.mrb[0].mxu0
        %v1105 = vpop.f32.mrb[0].mxu0
        %v1106 = vadd.f32 %v1010, %v1105
        %v1107 = vpop.f32.mrb[0].mxu0
        %1108 = vdwg.mxu0
        %v1109 = vld [vmem:[%s721] sm:$0xf]
        %v1110 = vld [vmem:[%s721 + $0x4] sm:$0xf]
        %v1111 = vld [vmem:[%s721 + $0x8] sm:$0xf]
        %v1112 = vld [vmem:[%s721 + $0xc] sm:$0xf]
        %v1113 = vld [vmem:[%s721 + $0x10] sm:$0xf]
        %v1114 = vld [vmem:[%s721 + $0x14] sm:$0xf]
        %v1115 = vld [vmem:[%s721 + $0x18] sm:$0xf]
        %v1116 = vld [vmem:[%s721 + $0x1c] sm:$0xf]
        %v1117 = vld [vmem:[%s721 + $0x20] sm:$0xf]
        %v1118 = vld [vmem:[%s721 + $0x24] sm:$0xf]
        %v1119 = vld [vmem:[%s721 + $0x28] sm:$0xf]
        %v1120 = vld [vmem:[%s721 + $0x2c] sm:$0xf]
        %v1121 = vld [vmem:[%s721 + $0x30] sm:$0xf]
        %v1122 = vld [vmem:[%s721 + $0x34] sm:$0xf]
        %v1123 = vld [vmem:[%s721 + $0x38] sm:$0xf]
        %v1124 = vld [vmem:[%s721 + $0x3c] sm:$0xf]
        %v1125 = vld [vmem:[%s876] sm:$0x1]
        %v1127 = vlaneseq
        %v1128 = vshrl.u32 %v1127, 7
        %v1129 = vsub.s32 0, %v1128
        %v1130 = vrot.slane %v1125, %v1129
        %v1148 = vunpack.c.l.b16 %v1109
        %v1149 = vunpack.c.l.b16 %v1110
        %v1150 = vunpack.c.l.b16 %v1111
        %v1151 = vunpack.c.l.b16 %v1112
        %v1152 = vunpack.c.l.b16 %v1113
        %v1153 = vunpack.c.l.b16 %v1114
        %v1154 = vunpack.c.l.b16 %v1115
        %v1155 = vunpack.c.l.b16 %v1116
        %v1156 = vunpack.c.l.b16 %v1117
        %v1157 = vunpack.c.l.b16 %v1118
        %v1158 = vunpack.c.l.b16 %v1119
        %v1159 = vunpack.c.l.b16 %v1120
        %v1160 = vunpack.c.l.b16 %v1121
        %v1161 = vunpack.c.l.b16 %v1122
        %v1162 = vunpack.c.l.b16 %v1123
        %v1163 = vunpack.c.l.b16 %v1124
        %v1164 = vpack.c.b16 %v1149, %v1148
        %v1165 = vpack.c.b16 %v1151, %v1150
        %v1166 = vpack.c.b16 %v1153, %v1152
        %v1167 = vpack.c.b16 %v1155, %v1154
        %v1168 = vpack.c.b16 %v1157, %v1156
        %v1169 = vpack.c.b16 %v1159, %v1158
        %v1170 = vpack.c.b16 %v1161, %v1160
        %v1171 = vpack.c.b16 %v1163, %v1162
        %1180 = vmatprep.subr.bf16.mxu0 0
        %1181 = vmatpush1.bf16.msra.mxu0 %v1164
        %1182 = vmatprep.subr.bf16.mxu0 0
        %1183 = vmatpush1.bf16.msra.mxu0 %v1165
        %1184 = vmatprep.subr.bf16.mxu0 0
        %1185 = vmatpush1.bf16.msra.mxu0 %v1166
        %1186 = vmatprep.subr.bf16.mxu0 0
        %1187 = vmatpush1.bf16.msra.mxu0 %v1167
        %1188 = vmatprep.subr.bf16.mxu0 0
        %1189 = vmatpush1.bf16.msra.mxu0 %v1168
        %1190 = vmatprep.subr.bf16.mxu0 0
        %1191 = vmatpush1.bf16.msra.mxu0 %v1169
        %1192 = vmatprep.subr.bf16.mxu0 0
        %1193 = vmatpush1.bf16.msra.mxu0 %v1170
        %1194 = vmatprep.subr.bf16.mxu0 0
        %1195 = vmatpush1.bf16.msra.mxu0 %v1171
        %1196 = vmatprep.subr.bf16.mxu0 0
        %1197 = vmatpush1.bf16.msra.mxu0 0
        %1198 = vmatprep.subr.bf16.mxu0 0
        %1199 = vmatpush1.bf16.msra.mxu0 0
        %1200 = vmatprep.subr.bf16.mxu0 0
        %1201 = vmatpush1.bf16.msra.mxu0 0
        %1202 = vmatprep.subr.bf16.mxu0 0
        %1203 = vmatpush1.bf16.msra.mxu0 0
        %1204 = vmatprep.subr.bf16.mxu0 0
        %1205 = vmatpush1.bf16.msra.mxu0 0
        %1206 = vmatprep.subr.bf16.mxu0 0
        %1207 = vmatpush1.bf16.msra.mxu0 0
        %1208 = vmatprep.subr.bf16.mxu0 0
        %1209 = vmatpush1.bf16.msra.mxu0 0
        %1210 = vmatprep.subr.bf16.mxu0 0
        %1211 = vmatpush1.bf16.msra.mxu0 0
        %1212 = vmatprep.mubr.bf16.mxu0 0
        %1213 = vmatmul.mubr.bf16.gmra.mrb[0].mxu0 %v987
        %v1214 = vpop.f32.mrb[0].mxu0
        %v1215 = vadd.f32 %v1130, %v1214
        %v1216 = vpop.f32.mrb[0].mxu0
        %v1217 = vpop.f32.mrb[0].mxu0
        %v1218 = vadd.f32 %v1130, %v1217
        %v1219 = vpop.f32.mrb[0].mxu0
        %1220 = vmatprep.mubr.bf16.mxu0 0
        %1221 = vmatmul.mubr.bf16.gmra.mrb[0].mxu0 %v988
        %v1222 = vpop.f32.mrb[0].mxu0
        %v1223 = vadd.f32 %v1130, %v1222
        %v1224 = vpop.f32.mrb[0].mxu0
        %v1225 = vpop.f32.mrb[0].mxu0
        %v1226 = vadd.f32 %v1130, %v1225
        %v1227 = vpop.f32.mrb[0].mxu0
        %1228 = vdwg.mxu0
        %v1229 = vld [vmem:[%s730] sm:$0xf]
        %v1230 = vld [vmem:[%s730 + $0x4] sm:$0xf]
        %v1231 = vld [vmem:[%s730 + $0x8] sm:$0xf]
        %v1232 = vld [vmem:[%s730 + $0xc] sm:$0xf]
        %v1233 = vld [vmem:[%s730 + $0x10] sm:$0xf]
        %v1234 = vld [vmem:[%s730 + $0x14] sm:$0xf]
        %v1235 = vld [vmem:[%s730 + $0x18] sm:$0xf]
        %v1236 = vld [vmem:[%s730 + $0x1c] sm:$0xf]
        %v1237 = vld [vmem:[%s730 + $0x20] sm:$0xf]
        %v1238 = vld [vmem:[%s730 + $0x24] sm:$0xf]
        %v1239 = vld [vmem:[%s730 + $0x28] sm:$0xf]
        %v1240 = vld [vmem:[%s730 + $0x2c] sm:$0xf]
        %v1241 = vld [vmem:[%s730 + $0x30] sm:$0xf]
        %v1242 = vld [vmem:[%s730 + $0x34] sm:$0xf]
        %v1243 = vld [vmem:[%s730 + $0x38] sm:$0xf]
        %v1244 = vld [vmem:[%s730 + $0x3c] sm:$0xf]
        %v1245 = vld [vmem:[%s879] sm:$0x1]
        %v1247 = vlaneseq
        %v1248 = vshrl.u32 %v1247, 7
        %v1249 = vsub.s32 0, %v1248
        %v1250 = vrot.slane %v1245, %v1249
        %v1268 = vunpack.c.l.b16 %v1229
        %v1269 = vunpack.c.l.b16 %v1230
        %v1270 = vunpack.c.l.b16 %v1231
        %v1271 = vunpack.c.l.b16 %v1232
        %v1272 = vunpack.c.l.b16 %v1233
        %v1273 = vunpack.c.l.b16 %v1234
        %v1274 = vunpack.c.l.b16 %v1235
        %v1275 = vunpack.c.l.b16 %v1236
        %v1276 = vunpack.c.l.b16 %v1237
        %v1277 = vunpack.c.l.b16 %v1238
        %v1278 = vunpack.c.l.b16 %v1239
        %v1279 = vunpack.c.l.b16 %v1240
        %v1280 = vunpack.c.l.b16 %v1241
        %v1281 = vunpack.c.l.b16 %v1242
        %v1282 = vunpack.c.l.b16 %v1243
        %v1283 = vunpack.c.l.b16 %v1244
        %v1284 = vpack.c.b16 %v1269, %v1268
        %v1285 = vpack.c.b16 %v1271, %v1270
        %v1286 = vpack.c.b16 %v1273, %v1272
        %v1287 = vpack.c.b16 %v1275, %v1274
        %v1288 = vpack.c.b16 %v1277, %v1276
        %v1289 = vpack.c.b16 %v1279, %v1278
        %v1290 = vpack.c.b16 %v1281, %v1280
        %v1291 = vpack.c.b16 %v1283, %v1282
        %1300 = vmatprep.subr.bf16.mxu0 0
        %1301 = vmatpush1.bf16.msra.mxu0 %v1284
        %1302 = vmatprep.subr.bf16.mxu0 0
        %1303 = vmatpush1.bf16.msra.mxu0 %v1285
        %1304 = vmatprep.subr.bf16.mxu0 0
        %1305 = vmatpush1.bf16.msra.mxu0 %v1286
        %1306 = vmatprep.subr.bf16.mxu0 0
        %1307 = vmatpush1.bf16.msra.mxu0 %v1287
        %1308 = vmatprep.subr.bf16.mxu0 0
        %1309 = vmatpush1.bf16.msra.mxu0 %v1288
        %1310 = vmatprep.subr.bf16.mxu0 0
        %1311 = vmatpush1.bf16.msra.mxu0 %v1289
        %1312 = vmatprep.subr.bf16.mxu0 0
        %1313 = vmatpush1.bf16.msra.mxu0 %v1290
        %1314 = vmatprep.subr.bf16.mxu0 0
        %1315 = vmatpush1.bf16.msra.mxu0 %v1291
        %1316 = vmatprep.subr.bf16.mxu0 0
        %1317 = vmatpush1.bf16.msra.mxu0 0
        %1318 = vmatprep.subr.bf16.mxu0 0
        %1319 = vmatpush1.bf16.msra.mxu0 0
        %1320 = vmatprep.subr.bf16.mxu0 0
        %1321 = vmatpush1.bf16.msra.mxu0 0
        %1322 = vmatprep.subr.bf16.mxu0 0
        %1323 = vmatpush1.bf16.msra.mxu0 0
        %1324 = vmatprep.subr.bf16.mxu0 0
        %1325 = vmatpush1.bf16.msra.mxu0 0
        %1326 = vmatprep.subr.bf16.mxu0 0
        %1327 = vmatpush1.bf16.msra.mxu0 0
        %1328 = vmatprep.subr.bf16.mxu0 0
        %1329 = vmatpush1.bf16.msra.mxu0 0
        %1330 = vmatprep.subr.bf16.mxu0 0
        %1331 = vmatpush1.bf16.msra.mxu0 0
        %1332 = vmatprep.mubr.bf16.mxu0 0
        %1333 = vmatmul.mubr.bf16.gmra.mrb[0].mxu0 %v987
        %v1334 = vpop.f32.mrb[0].mxu0
        %v1335 = vadd.f32 %v1250, %v1334
        %v1336 = vpop.f32.mrb[0].mxu0
        %v1337 = vpop.f32.mrb[0].mxu0
        %v1338 = vadd.f32 %v1250, %v1337
        %v1339 = vpop.f32.mrb[0].mxu0
        %1340 = vmatprep.mubr.bf16.mxu0 0
        %1341 = vmatmul.mubr.bf16.gmra.mrb[0].mxu0 %v988
        %v1342 = vpop.f32.mrb[0].mxu0
        %v1343 = vadd.f32 %v1250, %v1342
        %v1344 = vpop.f32.mrb[0].mxu0
        %v1345 = vpop.f32.mrb[0].mxu0
        %v1346 = vadd.f32 %v1250, %v1345
        %v1347 = vpop.f32.mrb[0].mxu0
        %1348 = vdwg.mxu0
        %v1349 = vld [vmem:[%s1] sm:$0xff]
        %v1350 = vld [vmem:[%s1 + $0x8] sm:$0xff]
        %v1351 = vld [vmem:[%s1 + $0x10] sm:$0xff]
        %v1352 = vld [vmem:[%s1 + $0x18] sm:$0xff]
        %v1353 = vpack.c.bf16 %v1095, %v1095
        %v1354 = vpack.c.bf16 %v1098, %v1098
        %v1355 = vpack.c.bf16 %v1103, %v1103
        %v1356 = vpack.c.bf16 %v1106, %v1106
        %v1357 = vpack.c.bf16 %v1215, %v1215
        %v1358 = vpack.c.bf16 %v1218, %v1218
        %v1359 = vpack.c.bf16 %v1223, %v1223
        %v1360 = vpack.c.bf16 %v1226, %v1226
        %v1361 = vpack.c.bf16 %v1335, %v1335
        %v1362 = vpack.c.bf16 %v1338, %v1338
        %v1363 = vpack.c.bf16 %v1343, %v1343
        %v1364 = vpack.c.bf16 %v1346, %v1346
        %1365 = vmatprep.subr.bf16.mxu0 0
        %1366 = vmatpush1.bf16.xpose.msra.mxu0 %v1357
        %1367 = vmatprep.subr.bf16.mxu0 0
        %1368 = vmatpush1.bf16.xpose.msra.mxu0 0
        %1369 = vmatprep.subr.bf16.mxu0 0
        %1370 = vmatpush1.bf16.xpose.msra.mxu0 0
        %1371 = vmatprep.subr.bf16.mxu0 0
        %1372 = vmatpush1.bf16.xpose.msra.mxu0 0
        %1373 = vmatprep.subr.bf16.mxu0 0
        %1374 = vmatpush1.bf16.xpose.msra.mxu0 0
        %1375 = vmatprep.subr.bf16.mxu0 0
        %1376 = vmatpush1.bf16.xpose.msra.mxu0 0
        %1377 = vmatprep.subr.bf16.mxu0 0
        %1378 = vmatpush1.bf16.xpose.msra.mxu0 0
        %1379 = vmatprep.subr.bf16.mxu0 0
        %1380 = vmatpush1.bf16.xpose.msra.mxu0 0
        %1381 = vmatprep.subr.bf16.mxu0 0
        %1382 = vmatpush1.bf16.xpose.msra.mxu0 0
        %1383 = vmatprep.subr.bf16.mxu0 0
        %1384 = vmatpush1.bf16.xpose.msra.mxu0 0
        %1385 = vmatprep.subr.bf16.mxu0 0
        %1386 = vmatpush1.bf16.xpose.msra.mxu0 0
        %1387 = vmatprep.subr.bf16.mxu0 0
        %1388 = vmatpush1.bf16.xpose.msra.mxu0 0
        %1389 = vmatprep.subr.bf16.mxu0 0
        %1390 = vmatpush1.bf16.xpose.msra.mxu0 0
        %1391 = vmatprep.subr.bf16.mxu0 0
        %1392 = vmatpush1.bf16.xpose.msra.mxu0 0
        %1393 = vmatprep.subr.bf16.mxu0 0
        %1394 = vmatpush1.bf16.xpose.msra.mxu0 0
        %1395 = vmatprep.subr.bf16.mxu0 0
        %1396 = vmatpush1.bf16.xpose.msra.mxu0 0
        %1397 = vmatprep.mubr.bf16.mxu0 0
        %1398 = vmatmul.mubr.bf16.gmra.mrb[0].mxu0 %v1353
        %v1399 = vpop.f32.mrb[0].mxu0
        %v1400 = vadd.f32 0.0, %v1399
        %v1401 = vpop.f32.mrb[0].mxu0
        %v1402 = vpop.f32.mrb[0].mxu0
        %v1403 = vpop.f32.mrb[0].mxu0
        %1404 = vdwg.mxu0
        %1405 = vmatprep.subr.bf16.mxu0 0
        %1406 = vmatpush1.bf16.xpose.msra.mxu0 %v1358
        %1407 = vmatprep.subr.bf16.mxu0 0
        %1408 = vmatpush1.bf16.xpose.msra.mxu0 0
        %1409 = vmatprep.subr.bf16.mxu0 0
        %1410 = vmatpush1.bf16.xpose.msra.mxu0 0
        %1411 = vmatprep.subr.bf16.mxu0 0
        %1412 = vmatpush1.bf16.xpose.msra.mxu0 0
        %1413 = vmatprep.subr.bf16.mxu0 0
        %1414 = vmatpush1.bf16.xpose.msra.mxu0 0
        %1415 = vmatprep.subr.bf16.mxu0 0
        %1416 = vmatpush1.bf16.xpose.msra.mxu0 0
        %1417 = vmatprep.subr.bf16.mxu0 0
        %1418 = vmatpush1.bf16.xpose.msra.mxu0 0
        %1419 = vmatprep.subr.bf16.mxu0 0
        %1420 = vmatpush1.bf16.xpose.msra.mxu0 0
        %1421 = vmatprep.subr.bf16.mxu0 0
        %1422 = vmatpush1.bf16.xpose.msra.mxu0 0
        %1423 = vmatprep.subr.bf16.mxu0 0
        %1424 = vmatpush1.bf16.xpose.msra.mxu0 0
        %1425 = vmatprep.subr.bf16.mxu0 0
        %1426 = vmatpush1.bf16.xpose.msra.mxu0 0
        %1427 = vmatprep.subr.bf16.mxu0 0
        %1428 = vmatpush1.bf16.xpose.msra.mxu0 0
        %1429 = vmatprep.subr.bf16.mxu0 0
        %1430 = vmatpush1.bf16.xpose.msra.mxu0 0
        %1431 = vmatprep.subr.bf16.mxu0 0
        %1432 = vmatpush1.bf16.xpose.msra.mxu0 0
        %1433 = vmatprep.subr.bf16.mxu0 0
        %1434 = vmatpush1.bf16.xpose.msra.mxu0 0
        %1435 = vmatprep.subr.bf16.mxu0 0
        %1436 = vmatpush1.bf16.xpose.msra.mxu0 0
        %1437 = vmatprep.mubr.bf16.mxu0 0
        %1438 = vmatmul.mubr.bf16.gmra.mrb[0].mxu0 %v1354
        %v1439 = vpop.f32.mrb[0].mxu0
        %v1440 = vadd.f32 0.0, %v1439
        %v1441 = vpop.f32.mrb[0].mxu0
        %v1442 = vpop.f32.mrb[0].mxu0
        %v1443 = vpop.f32.mrb[0].mxu0
        %1444 = vdwg.mxu0
        %1445 = vmatprep.subr.bf16.mxu0 0
        %1446 = vmatpush1.bf16.xpose.msra.mxu0 %v1359
        %1447 = vmatprep.subr.bf16.mxu0 0
        %1448 = vmatpush1.bf16.xpose.msra.mxu0 0
        %1449 = vmatprep.subr.bf16.mxu0 0
        %1450 = vmatpush1.bf16.xpose.msra.mxu0 0
        %1451 = vmatprep.subr.bf16.mxu0 0
        %1452 = vmatpush1.bf16.xpose.msra.mxu0 0
        %1453 = vmatprep.subr.bf16.mxu0 0
        %1454 = vmatpush1.bf16.xpose.msra.mxu0 0
        %1455 = vmatprep.subr.bf16.mxu0 0
        %1456 = vmatpush1.bf16.xpose.msra.mxu0 0
        %1457 = vmatprep.subr.bf16.mxu0 0
        %1458 = vmatpush1.bf16.xpose.msra.mxu0 0
        %1459 = vmatprep.subr.bf16.mxu0 0
        %1460 = vmatpush1.bf16.xpose.msra.mxu0 0
        %1461 = vmatprep.subr.bf16.mxu0 0
        %1462 = vmatpush1.bf16.xpose.msra.mxu0 0
        %1463 = vmatprep.subr.bf16.mxu0 0
        %1464 = vmatpush1.bf16.xpose.msra.mxu0 0
        %1465 = vmatprep.subr.bf16.mxu0 0
        %1466 = vmatpush1.bf16.xpose.msra.mxu0 0
        %1467 = vmatprep.subr.bf16.mxu0 0
        %1468 = vmatpush1.bf16.xpose.msra.mxu0 0
        %1469 = vmatprep.subr.bf16.mxu0 0
        %1470 = vmatpush1.bf16.xpose.msra.mxu0 0
        %1471 = vmatprep.subr.bf16.mxu0 0
        %1472 = vmatpush1.bf16.xpose.msra.mxu0 0
        %1473 = vmatprep.subr.bf16.mxu0 0
        %1474 = vmatpush1.bf16.xpose.msra.mxu0 0
        %1475 = vmatprep.subr.bf16.mxu0 0
        %1476 = vmatpush1.bf16.xpose.msra.mxu0 0
        %1477 = vmatprep.mubr.bf16.mxu0 0
        %1478 = vmatmul.mubr.bf16.gmra.mrb[0].mxu0 %v1355
        %v1479 = vpop.f32.mrb[0].mxu0
        %v1480 = vadd.f32 0.0, %v1479
        %v1481 = vpop.f32.mrb[0].mxu0
        %v1482 = vpop.f32.mrb[0].mxu0
        %v1483 = vpop.f32.mrb[0].mxu0
        %1484 = vdwg.mxu0
        %1485 = vmatprep.subr.bf16.mxu0 0
        %1486 = vmatpush1.bf16.xpose.msra.mxu0 %v1360
        %1487 = vmatprep.subr.bf16.mxu0 0
        %1488 = vmatpush1.bf16.xpose.msra.mxu0 0
        %1489 = vmatprep.subr.bf16.mxu0 0
        %1490 = vmatpush1.bf16.xpose.msra.mxu0 0
        %1491 = vmatprep.subr.bf16.mxu0 0
        %1492 = vmatpush1.bf16.xpose.msra.mxu0 0
        %1493 = vmatprep.subr.bf16.mxu0 0
        %1494 = vmatpush1.bf16.xpose.msra.mxu0 0
        %1495 = vmatprep.subr.bf16.mxu0 0
        %1496 = vmatpush1.bf16.xpose.msra.mxu0 0
        %1497 = vmatprep.subr.bf16.mxu0 0
        %1498 = vmatpush1.bf16.xpose.msra.mxu0 0
        %1499 = vmatprep.subr.bf16.mxu0 0
        %1500 = vmatpush1.bf16.xpose.msra.mxu0 0
        %1501 = vmatprep.subr.bf16.mxu0 0
        %1502 = vmatpush1.bf16.xpose.msra.mxu0 0
        %1503 = vmatprep.subr.bf16.mxu0 0
        %1504 = vmatpush1.bf16.xpose.msra.mxu0 0
        %1505 = vmatprep.subr.bf16.mxu0 0
        %1506 = vmatpush1.bf16.xpose.msra.mxu0 0
        %1507 = vmatprep.subr.bf16.mxu0 0
        %1508 = vmatpush1.bf16.xpose.msra.mxu0 0
        %1509 = vmatprep.subr.bf16.mxu0 0
        %1510 = vmatpush1.bf16.xpose.msra.mxu0 0
        %1511 = vmatprep.subr.bf16.mxu0 0
        %1512 = vmatpush1.bf16.xpose.msra.mxu0 0
        %1513 = vmatprep.subr.bf16.mxu0 0
        %1514 = vmatpush1.bf16.xpose.msra.mxu0 0
        %1515 = vmatprep.subr.bf16.mxu0 0
        %1516 = vmatpush1.bf16.xpose.msra.mxu0 0
        %1517 = vmatprep.mubr.bf16.mxu0 0
        %1518 = vmatmul.mubr.bf16.gmra.mrb[0].mxu0 %v1356
        %v1519 = vpop.f32.mrb[0].mxu0
        %v1520 = vadd.f32 0.0, %v1519
        %v1521 = vpop.f32.mrb[0].mxu0
        %v1522 = vpop.f32.mrb[0].mxu0
        %v1523 = vpop.f32.mrb[0].mxu0
        %1524 = vdwg.mxu0
        %v1525 = vmul.f32 %v1400, 0.17677669
        %v1526 = vmul.f32 %v1440, 0.17677669
        %v1527 = vmul.f32 %v1480, 0.17677669
        %v1528 = vmul.f32 %v1520, 0.17677669
        %v1529 = vadd.f32 %v1525, %v1349
        %v1530 = vadd.f32 %v1526, %v1350
        %v1531 = vadd.f32 %v1527, %v1351
        %v1532 = vadd.f32 %v1528, %v1352
        %vm1533 = vcmask 64512
        %v1534 = vsel %vm1533, %v1529, -inf
        %1535 = vmax.xlane.f32.xlu0 %v1534
        %v1536 = vpop.xlane.xlu0 %1535
        %v1537 = vsel %vm1533, %v1530, -inf
        %1538 = vmax.xlane.f32.xlu0 %v1537
        %v1539 = vpop.xlane.xlu0 %1538
        %v1540 = vsel %vm1533, %v1531, -inf
        %1541 = vmax.xlane.f32.xlu0 %v1540
        %v1542 = vpop.xlane.xlu0 %1541
        %v1543 = vsel %vm1533, %v1532, -inf
        %1544 = vmax.xlane.f32.xlu0 %v1543
        %v1545 = vpop.xlane.xlu0 %1544
        %v1546 = vsub.f32 %v1529, %v1536
        %v1547 = vsub.f32 %v1530, %v1539
        %v1548 = vsub.f32 %v1531, %v1542
        %v1549 = vsub.f32 %v1532, %v1545
        %v1550 = vmul.f32 %v1546, 1.442695
        %v1551 = vpow.pop %v1550
        %v1552 = vmul.f32 %v1547, 1.442695
        %v1553 = vpow.pop %v1552
        %v1554 = vmul.f32 %v1548, 1.442695
        %v1555 = vpow.pop %v1554
        %v1556 = vmul.f32 %v1549, 1.442695
        %v1557 = vpow.pop %v1556
        %v1558 = vsel %vm1533, %v1551, 0.0
        %1559 = vadd.xlane.f32.xlu0 %v1558
        %v1560 = vpop.xlane.xlu0 %1559
        %v1561 = vsel %vm1533, %v1553, 0.0
        %1562 = vadd.xlane.f32.xlu0 %v1561
        %v1563 = vpop.xlane.xlu0 %1562
        %v1564 = vsel %vm1533, %v1555, 0.0
        %1565 = vadd.xlane.f32.xlu0 %v1564
        %v1566 = vpop.xlane.xlu0 %1565
        %v1567 = vsel %vm1533, %v1557, 0.0
        %1568 = vadd.xlane.f32.xlu0 %v1567
        %v1569 = vpop.xlane.xlu0 %1568
        %v1570 = vrcp.pop %v1560
        %v1571 = vrcp.pop %v1563
        %v1572 = vrcp.pop %v1566
        %v1573 = vrcp.pop %v1569
        %v1574 = vmul.f32 %v1551, %v1570
        %v1575 = vmul.f32 %v1553, %v1571
        %v1576 = vmul.f32 %v1555, %v1572
        %v1577 = vmul.f32 %v1557, %v1573
        %v1578 = vpack.c.bf16 %v1574, %v1574
        %v1579 = vpack.c.bf16 %v1575, %v1575
        %v1580 = vpack.c.bf16 %v1576, %v1576
        %v1581 = vpack.c.bf16 %v1577, %v1577
        %v1583 = vsel %vm1533, %v1578, 0
        %vm1585 = vcmask 1043456
        %v1587 = vsel %vm1585, %v1361, 0
        %1589 = vmatprep.subr.bf16.mxu0 0
        %1590 = vmatpush1.bf16.msra.mxu0 %v1587
        %1591 = vmatprep.subr.bf16.mxu0 0
        %1592 = vmatpush1.bf16.msra.mxu0 0
        %1593 = vmatprep.subr.bf16.mxu0 0
        %1594 = vmatpush1.bf16.msra.mxu0 0
        %1595 = vmatprep.subr.bf16.mxu0 0
        %1596 = vmatpush1.bf16.msra.mxu0 0
        %1597 = vmatprep.subr.bf16.mxu0 0
        %1598 = vmatpush1.bf16.msra.mxu0 0
        %1599 = vmatprep.subr.bf16.mxu0 0
        %1600 = vmatpush1.bf16.msra.mxu0 0
        %1601 = vmatprep.subr.bf16.mxu0 0
        %1602 = vmatpush1.bf16.msra.mxu0 0
        %1603 = vmatprep.subr.bf16.mxu0 0
        %1604 = vmatpush1.bf16.msra.mxu0 0
        %1605 = vmatprep.subr.bf16.mxu0 0
        %1606 = vmatpush1.bf16.msra.mxu0 0
        %1607 = vmatprep.subr.bf16.mxu0 0
        %1608 = vmatpush1.bf16.msra.mxu0 0
        %1609 = vmatprep.subr.bf16.mxu0 0
        %1610 = vmatpush1.bf16.msra.mxu0 0
        %1611 = vmatprep.subr.bf16.mxu0 0
        %1612 = vmatpush1.bf16.msra.mxu0 0
        %1613 = vmatprep.subr.bf16.mxu0 0
        %1614 = vmatpush1.bf16.msra.mxu0 0
        %1615 = vmatprep.subr.bf16.mxu0 0
        %1616 = vmatpush1.bf16.msra.mxu0 0
        %1617 = vmatprep.subr.bf16.mxu0 0
        %1618 = vmatpush1.bf16.msra.mxu0 0
        %1619 = vmatprep.subr.bf16.mxu0 0
        %1620 = vmatpush1.bf16.msra.mxu0 0
        %1621 = vmatprep.mubr.bf16.mxu0 0
        %1622 = vmatmul.mubr.bf16.gmra.mrb[0].mxu0 %v1583
        %v1623 = vpop.f32.mrb[0].mxu0
        %v1624 = vadd.f32 0.0, %v1623
        %v1625 = vpop.f32.mrb[0].mxu0
        %v1626 = vpop.f32.mrb[0].mxu0
        %v1627 = vpop.f32.mrb[0].mxu0
        %1628 = vdwg.mxu0
        %v1630 = vsel %vm1533, %v1579, 0
        %v1633 = vsel %vm1585, %v1362, 0
        %1635 = vmatprep.subr.bf16.mxu0 0
        %1636 = vmatpush1.bf16.msra.mxu0 %v1633
        %1637 = vmatprep.subr.bf16.mxu0 0
        %1638 = vmatpush1.bf16.msra.mxu0 0
        %1639 = vmatprep.subr.bf16.mxu0 0
        %1640 = vmatpush1.bf16.msra.mxu0 0
        %1641 = vmatprep.subr.bf16.mxu0 0
        %1642 = vmatpush1.bf16.msra.mxu0 0
        %1643 = vmatprep.subr.bf16.mxu0 0
        %1644 = vmatpush1.bf16.msra.mxu0 0
        %1645 = vmatprep.subr.bf16.mxu0 0
        %1646 = vmatpush1.bf16.msra.mxu0 0
        %1647 = vmatprep.subr.bf16.mxu0 0
        %1648 = vmatpush1.bf16.msra.mxu0 0
        %1649 = vmatprep.subr.bf16.mxu0 0
        %1650 = vmatpush1.bf16.msra.mxu0 0
        %1651 = vmatprep.subr.bf16.mxu0 0
        %1652 = vmatpush1.bf16.msra.mxu0 0
        %1653 = vmatprep.subr.bf16.mxu0 0
        %1654 = vmatpush1.bf16.msra.mxu0 0
        %1655 = vmatprep.subr.bf16.mxu0 0
        %1656 = vmatpush1.bf16.msra.mxu0 0
        %1657 = vmatprep.subr.bf16.mxu0 0
        %1658 = vmatpush1.bf16.msra.mxu0 0
        %1659 = vmatprep.subr.bf16.mxu0 0
        %1660 = vmatpush1.bf16.msra.mxu0 0
        %1661 = vmatprep.subr.bf16.mxu0 0
        %1662 = vmatpush1.bf16.msra.mxu0 0
        %1663 = vmatprep.subr.bf16.mxu0 0
        %1664 = vmatpush1.bf16.msra.mxu0 0
        %1665 = vmatprep.subr.bf16.mxu0 0
        %1666 = vmatpush1.bf16.msra.mxu0 0
        %1667 = vmatprep.mubr.bf16.mxu0 0
        %1668 = vmatmul.mubr.bf16.gmra.mrb[0].mxu0 %v1630
        %v1669 = vpop.f32.mrb[0].mxu0
        %v1670 = vadd.f32 0.0, %v1669
        %v1671 = vpop.f32.mrb[0].mxu0
        %v1672 = vpop.f32.mrb[0].mxu0
        %v1673 = vpop.f32.mrb[0].mxu0
        %1674 = vdwg.mxu0
        %v1676 = vsel %vm1533, %v1580, 0
        %v1679 = vsel %vm1585, %v1363, 0
        %1681 = vmatprep.subr.bf16.mxu0 0
        %1682 = vmatpush1.bf16.msra.mxu0 %v1679
        %1683 = vmatprep.subr.bf16.mxu0 0
        %1684 = vmatpush1.bf16.msra.mxu0 0
        %1685 = vmatprep.subr.bf16.mxu0 0
        %1686 = vmatpush1.bf16.msra.mxu0 0
        %1687 = vmatprep.subr.bf16.mxu0 0
        %1688 = vmatpush1.bf16.msra.mxu0 0
        %1689 = vmatprep.subr.bf16.mxu0 0
        %1690 = vmatpush1.bf16.msra.mxu0 0
        %1691 = vmatprep.subr.bf16.mxu0 0
        %1692 = vmatpush1.bf16.msra.mxu0 0
        %1693 = vmatprep.subr.bf16.mxu0 0
        %1694 = vmatpush1.bf16.msra.mxu0 0
        %1695 = vmatprep.subr.bf16.mxu0 0
        %1696 = vmatpush1.bf16.msra.mxu0 0
        %1697 = vmatprep.subr.bf16.mxu0 0
        %1698 = vmatpush1.bf16.msra.mxu0 0
        %1699 = vmatprep.subr.bf16.mxu0 0
        %1700 = vmatpush1.bf16.msra.mxu0 0
        %1701 = vmatprep.subr.bf16.mxu0 0
        %1702 = vmatpush1.bf16.msra.mxu0 0
        %1703 = vmatprep.subr.bf16.mxu0 0
        %1704 = vmatpush1.bf16.msra.mxu0 0
        %1705 = vmatprep.subr.bf16.mxu0 0
        %1706 = vmatpush1.bf16.msra.mxu0 0
        %1707 = vmatprep.subr.bf16.mxu0 0
        %1708 = vmatpush1.bf16.msra.mxu0 0
        %1709 = vmatprep.subr.bf16.mxu0 0
        %1710 = vmatpush1.bf16.msra.mxu0 0
        %1711 = vmatprep.subr.bf16.mxu0 0
        %1712 = vmatpush1.bf16.msra.mxu0 0
        %1713 = vmatprep.mubr.bf16.mxu0 0
        %1714 = vmatmul.mubr.bf16.gmra.mrb[0].mxu0 %v1676
        %v1715 = vpop.f32.mrb[0].mxu0
        %v1716 = vadd.f32 0.0, %v1715
        %v1717 = vpop.f32.mrb[0].mxu0
        %v1718 = vpop.f32.mrb[0].mxu0
        %v1719 = vpop.f32.mrb[0].mxu0
        %1720 = vdwg.mxu0
        %v1722 = vsel %vm1533, %v1581, 0
        %v1725 = vsel %vm1585, %v1364, 0
        %1727 = vmatprep.subr.bf16.mxu0 0
        %1728 = vmatpush1.bf16.msra.mxu0 %v1725
        %1729 = vmatprep.subr.bf16.mxu0 0
        %1730 = vmatpush1.bf16.msra.mxu0 0
        %1731 = vmatprep.subr.bf16.mxu0 0
        %1732 = vmatpush1.bf16.msra.mxu0 0
        %1733 = vmatprep.subr.bf16.mxu0 0
        %1734 = vmatpush1.bf16.msra.mxu0 0
        %1735 = vmatprep.subr.bf16.mxu0 0
        %1736 = vmatpush1.bf16.msra.mxu0 0
        %1737 = vmatprep.subr.bf16.mxu0 0
        %1738 = vmatpush1.bf16.msra.mxu0 0
        %1739 = vmatprep.subr.bf16.mxu0 0
        %1740 = vmatpush1.bf16.msra.mxu0 0
        %1741 = vmatprep.subr.bf16.mxu0 0
        %1742 = vmatpush1.bf16.msra.mxu0 0
        %1743 = vmatprep.subr.bf16.mxu0 0
        %1744 = vmatpush1.bf16.msra.mxu0 0
        %1745 = vmatprep.subr.bf16.mxu0 0
        %1746 = vmatpush1.bf16.msra.mxu0 0
        %1747 = vmatprep.subr.bf16.mxu0 0
        %1748 = vmatpush1.bf16.msra.mxu0 0
        %1749 = vmatprep.subr.bf16.mxu0 0
        %1750 = vmatpush1.bf16.msra.mxu0 0
        %1751 = vmatprep.subr.bf16.mxu0 0
        %1752 = vmatpush1.bf16.msra.mxu0 0
        %1753 = vmatprep.subr.bf16.mxu0 0
        %1754 = vmatpush1.bf16.msra.mxu0 0
        %1755 = vmatprep.subr.bf16.mxu0 0
        %1756 = vmatpush1.bf16.msra.mxu0 0
        %1757 = vmatprep.subr.bf16.mxu0 0
        %1758 = vmatpush1.bf16.msra.mxu0 0
        %1759 = vmatprep.mubr.bf16.mxu0 0
        %1760 = vmatmul.mubr.bf16.gmra.mrb[0].mxu0 %v1722
        %v1761 = vpop.f32.mrb[0].mxu0
        %v1762 = vadd.f32 0.0, %v1761
        %v1763 = vpop.f32.mrb[0].mxu0
        %v1764 = vpop.f32.mrb[0].mxu0
        %v1765 = vpop.f32.mrb[0].mxu0
        %1766 = vdwg.mxu0
        %v1767 = vpack.c.bf16 %v1670, %v1624
        %v1768 = vpack.c.bf16 %v1762, %v1716
        %v1769 = vld [vmem:[%s739] sm:$0xf]
        %v1770 = vld [vmem:[%s739 + $0x4] sm:$0xf]
        %v1771 = vld [vmem:[%s739 + $0x8] sm:$0xf]
        %v1772 = vld [vmem:[%s739 + $0xc] sm:$0xf]
        %v1773 = vld [vmem:[%s739 + $0x10] sm:$0xf]
        %v1774 = vld [vmem:[%s739 + $0x14] sm:$0xf]
        %v1775 = vld [vmem:[%s739 + $0x18] sm:$0xf]
        %v1776 = vld [vmem:[%s739 + $0x1c] sm:$0xf]
        %v1777 = vld [vmem:[%s739 + $0x20] sm:$0xf]
        %v1778 = vld [vmem:[%s739 + $0x24] sm:$0xf]
        %v1779 = vld [vmem:[%s739 + $0x28] sm:$0xf]
        %v1780 = vld [vmem:[%s739 + $0x2c] sm:$0xf]
        %v1781 = vld [vmem:[%s739 + $0x30] sm:$0xf]
        %v1782 = vld [vmem:[%s739 + $0x34] sm:$0xf]
        %v1783 = vld [vmem:[%s739 + $0x38] sm:$0xf]
        %v1784 = vld [vmem:[%s739 + $0x3c] sm:$0xf]
        %v1785 = vld [vmem:[%s882] sm:$0x1]
        %v1787 = vlaneseq
        %v1788 = vshrl.u32 %v1787, 7
        %v1789 = vsub.s32 0, %v1788
        %v1790 = vrot.slane %v1785, %v1789
        %v1808 = vunpack.c.l.b16 %v1769
        %v1809 = vunpack.c.l.b16 %v1770
        %v1810 = vunpack.c.l.b16 %v1771
        %v1811 = vunpack.c.l.b16 %v1772
        %v1812 = vunpack.c.l.b16 %v1773
        %v1813 = vunpack.c.l.b16 %v1774
        %v1814 = vunpack.c.l.b16 %v1775
        %v1815 = vunpack.c.l.b16 %v1776
        %v1816 = vunpack.c.l.b16 %v1777
        %v1817 = vunpack.c.l.b16 %v1778
        %v1818 = vunpack.c.l.b16 %v1779
        %v1819 = vunpack.c.l.b16 %v1780
        %v1820 = vunpack.c.l.b16 %v1781
        %v1821 = vunpack.c.l.b16 %v1782
        %v1822 = vunpack.c.l.b16 %v1783
        %v1823 = vunpack.c.l.b16 %v1784
        %v1824 = vpack.c.b16 %v1809, %v1808
        %v1825 = vpack.c.b16 %v1811, %v1810
        %v1826 = vpack.c.b16 %v1813, %v1812
        %v1827 = vpack.c.b16 %v1815, %v1814
        %v1828 = vpack.c.b16 %v1817, %v1816
        %v1829 = vpack.c.b16 %v1819, %v1818
        %v1830 = vpack.c.b16 %v1821, %v1820
        %v1831 = vpack.c.b16 %v1823, %v1822
        %1840 = vmatprep.subr.bf16.mxu0 0
        %1841 = vmatpush1.bf16.msra.mxu0 %v1824
        %1842 = vmatprep.subr.bf16.mxu0 0
        %1843 = vmatpush1.bf16.msra.mxu0 %v1825
        %1844 = vmatprep.subr.bf16.mxu0 0
        %1845 = vmatpush1.bf16.msra.mxu0 %v1826
        %1846 = vmatprep.subr.bf16.mxu0 0
        %1847 = vmatpush1.bf16.msra.mxu0 %v1827
        %1848 = vmatprep.subr.bf16.mxu0 0
        %1849 = vmatpush1.bf16.msra.mxu0 %v1828
        %1850 = vmatprep.subr.bf16.mxu0 0
        %1851 = vmatpush1.bf16.msra.mxu0 %v1829
        %1852 = vmatprep.subr.bf16.mxu0 0
        %1853 = vmatpush1.bf16.msra.mxu0 %v1830
        %1854 = vmatprep.subr.bf16.mxu0 0
        %1855 = vmatpush1.bf16.msra.mxu0 %v1831
        %1856 = vmatprep.subr.bf16.mxu0 0
        %1857 = vmatpush1.bf16.msra.mxu0 0
        %1858 = vmatprep.subr.bf16.mxu0 0
        %1859 = vmatpush1.bf16.msra.mxu0 0
        %1860 = vmatprep.subr.bf16.mxu0 0
        %1861 = vmatpush1.bf16.msra.mxu0 0
        %1862 = vmatprep.subr.bf16.mxu0 0
        %1863 = vmatpush1.bf16.msra.mxu0 0
        %1864 = vmatprep.subr.bf16.mxu0 0
        %1865 = vmatpush1.bf16.msra.mxu0 0
        %1866 = vmatprep.subr.bf16.mxu0 0
        %1867 = vmatpush1.bf16.msra.mxu0 0
        %1868 = vmatprep.subr.bf16.mxu0 0
        %1869 = vmatpush1.bf16.msra.mxu0 0
        %1870 = vmatprep.subr.bf16.mxu0 0
        %1871 = vmatpush1.bf16.msra.mxu0 0
        %1872 = vmatprep.mubr.bf16.mxu0 0
        %1873 = vmatmul.mubr.bf16.gmra.mrb[0].mxu0 %v1767
        %v1874 = vpop.f32.mrb[0].mxu0
        %v1875 = vadd.f32 %v1790, %v1874
        %v1876 = vpop.f32.mrb[0].mxu0
        %v1877 = vpop.f32.mrb[0].mxu0
        %v1878 = vadd.f32 %v1790, %v1877
        %v1879 = vpop.f32.mrb[0].mxu0
        %1880 = vmatprep.mubr.bf16.mxu0 0
        %1881 = vmatmul.mubr.bf16.gmra.mrb[0].mxu0 %v1768
        %v1882 = vpop.f32.mrb[0].mxu0
        %v1883 = vadd.f32 %v1790, %v1882
        %v1884 = vpop.f32.mrb[0].mxu0
        %v1885 = vpop.f32.mrb[0].mxu0
        %v1886 = vadd.f32 %v1790, %v1885
        %v1887 = vpop.f32.mrb[0].mxu0
        %1888 = vdwg.mxu0
        %v1889 = vadd.f32 %v908, %v1875
        %v1890 = vadd.f32 %v909, %v1878
        %v1891 = vadd.f32 %v910, %v1883
        %v1892 = vadd.f32 %v911, %v1886
        %v1893 = vld [vmem:[%s885] sm:$0x1]
        %v1894 = vld [vmem:[%s888] sm:$0x1]
        %1895 = vadd.xlane.f32.xlu0 %v1889
        %v1896 = vpop.xlane.xlu0 %1895
        %1897 = vadd.xlane.f32.xlu0 %v1890
        %v1898 = vpop.xlane.xlu0 %1897
        %1899 = vadd.xlane.f32.xlu0 %v1891
        %v1900 = vpop.xlane.xlu0 %1899
        %1901 = vadd.xlane.f32.xlu0 %v1892
        %v1902 = vpop.xlane.xlu0 %1901
        %v1903 = vmul.f32 %v1896, 0.03125
        %v1904 = vmul.f32 %v1898, 0.03125
        %v1905 = vmul.f32 %v1900, 0.03125
        %v1906 = vmul.f32 %v1902, 0.03125
        %v1907 = vsub.f32 %v1889, %v1903
        %v1908 = vsub.f32 %v1890, %v1904
        %v1909 = vsub.f32 %v1891, %v1905
        %v1910 = vsub.f32 %v1892, %v1906
        %v1911 = vmul.f32 %v1907, %v1907
        %v1912 = vmul.f32 %v1908, %v1908
        %v1913 = vmul.f32 %v1909, %v1909
        %v1914 = vmul.f32 %v1910, %v1910
        %v1915 = vsel %vm938, %v1911, 0.0
        %v1916 = vsel %vm938, %v1912, 0.0
        %v1917 = vsel %vm938, %v1913, 0.0
        %v1918 = vsel %vm938, %v1914, 0.0
        %1919 = vadd.xlane.f32.xlu0 %v1915
        %v1920 = vpop.xlane.xlu0 %1919
        %1921 = vadd.xlane.f32.xlu0 %v1916
        %v1922 = vpop.xlane.xlu0 %1921
        %1923 = vadd.xlane.f32.xlu0 %v1917
        %v1924 = vpop.xlane.xlu0 %1923
        %1925 = vadd.xlane.f32.xlu0 %v1918
        %v1926 = vpop.xlane.xlu0 %1925
        %v1927 = vmul.f32 %v1920, 0.03125
        %v1928 = vmul.f32 %v1922, 0.03125
        %v1929 = vmul.f32 %v1924, 0.03125
        %v1930 = vmul.f32 %v1926, 0.03125
        %v1931 = vadd.f32 %v1927, 1e-05
        %v1932 = vadd.f32 %v1928, 1e-05
        %v1933 = vadd.f32 %v1929, 1e-05
        %v1934 = vadd.f32 %v1930, 1e-05
        %v1935 = vrsqrt.pop %v1931
        %v1936 = vrsqrt.pop %v1932
        %v1937 = vrsqrt.pop %v1933
        %v1938 = vrsqrt.pop %v1934
        %v1939 = vmul.f32 %v1907, %v1935
        %v1940 = vmul.f32 %v1908, %v1936
        %v1941 = vmul.f32 %v1909, %v1937
        %v1942 = vmul.f32 %v1910, %v1938
        %v1944 = vlaneseq
        %v1945 = vshrl.u32 %v1944, 7
        %v1946 = vsub.s32 0, %v1945
        %v1947 = vrot.slane %v1893, %v1946
        %v1949 = vmul.f32 %v1939, %v1947
        %v1950 = vmul.f32 %v1940, %v1947
        %v1951 = vmul.f32 %v1941, %v1947
        %v1952 = vmul.f32 %v1942, %v1947
        %v1954 = vlaneseq
        %v1955 = vshrl.u32 %v1954, 7
        %v1956 = vsub.s32 0, %v1955
        %v1957 = vrot.slane %v1894, %v1956
        %v1959 = vadd.f32 %v1949, %v1957
        %v1960 = vadd.f32 %v1950, %v1957
        %v1961 = vadd.f32 %v1951, %v1957
        %v1962 = vadd.f32 %v1952, %v1957
        %v1963 = vpack.c.bf16 %v1960, %v1959
        %v1964 = vpack.c.bf16 %v1962, %v1961
        %v1965 = vld [vmem:[%s748] sm:$0xf]
        %v1966 = vld [vmem:[%s748 + $0x4] sm:$0xf]
        %v1967 = vld [vmem:[%s748 + $0x8] sm:$0xf]
        %v1968 = vld [vmem:[%s748 + $0xc] sm:$0xf]
        %v1969 = vld [vmem:[%s748 + $0x10] sm:$0xf]
        %v1970 = vld [vmem:[%s748 + $0x14] sm:$0xf]
        %v1971 = vld [vmem:[%s748 + $0x18] sm:$0xf]
        %v1972 = vld [vmem:[%s748 + $0x1c] sm:$0xf]
        %v1973 = vld [vmem:[%s748 + $0x20] sm:$0xf]
        %v1974 = vld [vmem:[%s748 + $0x24] sm:$0xf]
        %v1975 = vld [vmem:[%s748 + $0x28] sm:$0xf]
        %v1976 = vld [vmem:[%s748 + $0x2c] sm:$0xf]
        %v1977 = vld [vmem:[%s748 + $0x30] sm:$0xf]
        %v1978 = vld [vmem:[%s748 + $0x34] sm:$0xf]
        %v1979 = vld [vmem:[%s748 + $0x38] sm:$0xf]
        %v1980 = vld [vmem:[%s748 + $0x3c] sm:$0xf]
        %v1981 = vld [vmem:[%s891] sm:$0x1]
        %v1983 = vlaneseq
        %v1984 = vshrl.u32 %v1983, 7
        %v1985 = vsub.s32 0, %v1984
        %v1986 = vrot.slane %v1981, %v1985
        %v2004 = vunpack.c.l.b16 %v1965
        %v2005 = vunpack.c.l.b16 %v1966
        %v2006 = vunpack.c.l.b16 %v1967
        %v2007 = vunpack.c.l.b16 %v1968
        %v2008 = vunpack.c.l.b16 %v1969
        %v2009 = vunpack.c.l.b16 %v1970
        %v2010 = vunpack.c.l.b16 %v1971
        %v2011 = vunpack.c.l.b16 %v1972
        %v2012 = vunpack.c.l.b16 %v1973
        %v2013 = vunpack.c.l.b16 %v1974
        %v2014 = vunpack.c.l.b16 %v1975
        %v2015 = vunpack.c.l.b16 %v1976
        %v2016 = vunpack.c.l.b16 %v1977
        %v2017 = vunpack.c.l.b16 %v1978
        %v2018 = vunpack.c.l.b16 %v1979
        %v2019 = vunpack.c.l.b16 %v1980
        %v2020 = vpack.c.b16 %v2005, %v2004
        %v2021 = vpack.c.b16 %v2007, %v2006
        %v2022 = vpack.c.b16 %v2009, %v2008
        %v2023 = vpack.c.b16 %v2011, %v2010
        %v2024 = vpack.c.b16 %v2013, %v2012
        %v2025 = vpack.c.b16 %v2015, %v2014
        %v2026 = vpack.c.b16 %v2017, %v2016
        %v2027 = vpack.c.b16 %v2019, %v2018
        %2036 = vmatprep.subr.bf16.mxu0 0
        %2037 = vmatpush1.bf16.msra.mxu0 %v2020
        %2038 = vmatprep.subr.bf16.mxu0 0
        %2039 = vmatpush1.bf16.msra.mxu0 %v2021
        %2040 = vmatprep.subr.bf16.mxu0 0
        %2041 = vmatpush1.bf16.msra.mxu0 %v2022
        %2042 = vmatprep.subr.bf16.mxu0 0
        %2043 = vmatpush1.bf16.msra.mxu0 %v2023
        %2044 = vmatprep.subr.bf16.mxu0 0
        %2045 = vmatpush1.bf16.msra.mxu0 %v2024
        %2046 = vmatprep.subr.bf16.mxu0 0
        %2047 = vmatpush1.bf16.msra.mxu0 %v2025
        %2048 = vmatprep.subr.bf16.mxu0 0
        %2049 = vmatpush1.bf16.msra.mxu0 %v2026
        %2050 = vmatprep.subr.bf16.mxu0 0
        %2051 = vmatpush1.bf16.msra.mxu0 %v2027
        %2052 = vmatprep.subr.bf16.mxu0 0
        %2053 = vmatpush1.bf16.msra.mxu0 0
        %2054 = vmatprep.subr.bf16.mxu0 0
        %2055 = vmatpush1.bf16.msra.mxu0 0
        %2056 = vmatprep.subr.bf16.mxu0 0
        %2057 = vmatpush1.bf16.msra.mxu0 0
        %2058 = vmatprep.subr.bf16.mxu0 0
        %2059 = vmatpush1.bf16.msra.mxu0 0
        %2060 = vmatprep.subr.bf16.mxu0 0
        %2061 = vmatpush1.bf16.msra.mxu0 0
        %2062 = vmatprep.subr.bf16.mxu0 0
        %2063 = vmatpush1.bf16.msra.mxu0 0
        %2064 = vmatprep.subr.bf16.mxu0 0
        %2065 = vmatpush1.bf16.msra.mxu0 0
        %2066 = vmatprep.subr.bf16.mxu0 0
        %2067 = vmatpush1.bf16.msra.mxu0 0
        %2068 = vmatprep.mubr.bf16.mxu0 0
        %2069 = vmatmul.mubr.bf16.gmra.mrb[0].mxu0 %v1963
        %v2070 = vpop.f32.mrb[0].mxu0
        %v2071 = vadd.f32 %v1986, %v2070
        %v2072 = vpop.f32.mrb[0].mxu0
        %v2073 = vpop.f32.mrb[0].mxu0
        %v2074 = vadd.f32 %v1986, %v2073
        %v2075 = vpop.f32.mrb[0].mxu0
        %2076 = vmatprep.mubr.bf16.mxu0 0
        %2077 = vmatmul.mubr.bf16.gmra.mrb[0].mxu0 %v1964
        %v2078 = vpop.f32.mrb[0].mxu0
        %v2079 = vadd.f32 %v1986, %v2078
        %v2080 = vpop.f32.mrb[0].mxu0
        %v2081 = vpop.f32.mrb[0].mxu0
        %v2082 = vadd.f32 %v1986, %v2081
        %v2083 = vpop.f32.mrb[0].mxu0
        %2084 = vdwg.mxu0
        %v2085 = vmax.f32 %v2071, 0.0
        %v2086 = vmax.f32 %v2074, 0.0
        %v2087 = vmax.f32 %v2079, 0.0
        %v2088 = vmax.f32 %v2082, 0.0
        %v2089 = vpack.c.bf16 %v2086, %v2085
        %v2090 = vpack.c.bf16 %v2088, %v2087
        %v2091 = vld [vmem:[%s757] sm:$0xf]
        %v2092 = vld [vmem:[%s757 + $0x4] sm:$0xf]
        %v2093 = vld [vmem:[%s757 + $0x8] sm:$0xf]
        %v2094 = vld [vmem:[%s757 + $0xc] sm:$0xf]
        %v2095 = vld [vmem:[%s757 + $0x10] sm:$0xf]
        %v2096 = vld [vmem:[%s757 + $0x14] sm:$0xf]
        %v2097 = vld [vmem:[%s757 + $0x18] sm:$0xf]
        %v2098 = vld [vmem:[%s757 + $0x1c] sm:$0xf]
        %v2099 = vld [vmem:[%s757 + $0x20] sm:$0xf]
        %v2100 = vld [vmem:[%s757 + $0x24] sm:$0xf]
        %v2101 = vld [vmem:[%s757 + $0x28] sm:$0xf]
        %v2102 = vld [vmem:[%s757 + $0x2c] sm:$0xf]
        %v2103 = vld [vmem:[%s757 + $0x30] sm:$0xf]
        %v2104 = vld [vmem:[%s757 + $0x34] sm:$0xf]
        %v2105 = vld [vmem:[%s757 + $0x38] sm:$0xf]
        %v2106 = vld [vmem:[%s757 + $0x3c] sm:$0xf]
        %v2107 = vld [vmem:[%s894] sm:$0x1]
        %v2109 = vlaneseq
        %v2110 = vshrl.u32 %v2109, 7
        %v2111 = vsub.s32 0, %v2110
        %v2112 = vrot.slane %v2107, %v2111
        %v2130 = vunpack.c.l.b16 %v2091
        %v2131 = vunpack.c.l.b16 %v2092
        %v2132 = vunpack.c.l.b16 %v2093
        %v2133 = vunpack.c.l.b16 %v2094
        %v2134 = vunpack.c.l.b16 %v2095
        %v2135 = vunpack.c.l.b16 %v2096
        %v2136 = vunpack.c.l.b16 %v2097
        %v2137 = vunpack.c.l.b16 %v2098
        %v2138 = vunpack.c.l.b16 %v2099
        %v2139 = vunpack.c.l.b16 %v2100
        %v2140 = vunpack.c.l.b16 %v2101
        %v2141 = vunpack.c.l.b16 %v2102
        %v2142 = vunpack.c.l.b16 %v2103
        %v2143 = vunpack.c.l.b16 %v2104
        %v2144 = vunpack.c.l.b16 %v2105
        %v2145 = vunpack.c.l.b16 %v2106
        %v2146 = vpack.c.b16 %v2131, %v2130
        %v2147 = vpack.c.b16 %v2133, %v2132
        %v2148 = vpack.c.b16 %v2135, %v2134
        %v2149 = vpack.c.b16 %v2137, %v2136
        %v2150 = vpack.c.b16 %v2139, %v2138
        %v2151 = vpack.c.b16 %v2141, %v2140
        %v2152 = vpack.c.b16 %v2143, %v2142
        %v2153 = vpack.c.b16 %v2145, %v2144
        %2162 = vmatprep.subr.bf16.mxu0 0
        %2163 = vmatpush1.bf16.msra.mxu0 %v2146
        %2164 = vmatprep.subr.bf16.mxu0 0
        %2165 = vmatpush1.bf16.msra.mxu0 %v2147
        %2166 = vmatprep.subr.bf16.mxu0 0
        %2167 = vmatpush1.bf16.msra.mxu0 %v2148
        %2168 = vmatprep.subr.bf16.mxu0 0
        %2169 = vmatpush1.bf16.msra.mxu0 %v2149
        %2170 = vmatprep.subr.bf16.mxu0 0
        %2171 = vmatpush1.bf16.msra.mxu0 %v2150
        %2172 = vmatprep.subr.bf16.mxu0 0
        %2173 = vmatpush1.bf16.msra.mxu0 %v2151
        %2174 = vmatprep.subr.bf16.mxu0 0
        %2175 = vmatpush1.bf16.msra.mxu0 %v2152
        %2176 = vmatprep.subr.bf16.mxu0 0
        %2177 = vmatpush1.bf16.msra.mxu0 %v2153
        %2178 = vmatprep.subr.bf16.mxu0 0
        %2179 = vmatpush1.bf16.msra.mxu0 0
        %2180 = vmatprep.subr.bf16.mxu0 0
        %2181 = vmatpush1.bf16.msra.mxu0 0
        %2182 = vmatprep.subr.bf16.mxu0 0
        %2183 = vmatpush1.bf16.msra.mxu0 0
        %2184 = vmatprep.subr.bf16.mxu0 0
        %2185 = vmatpush1.bf16.msra.mxu0 0
        %2186 = vmatprep.subr.bf16.mxu0 0
        %2187 = vmatpush1.bf16.msra.mxu0 0
        %2188 = vmatprep.subr.bf16.mxu0 0
        %2189 = vmatpush1.bf16.msra.mxu0 0
        %2190 = vmatprep.subr.bf16.mxu0 0
        %2191 = vmatpush1.bf16.msra.mxu0 0
        %2192 = vmatprep.subr.bf16.mxu0 0
        %2193 = vmatpush1.bf16.msra.mxu0 0
        %2194 = vmatprep.mubr.bf16.mxu0 0
        %2195 = vmatmul.mubr.bf16.gmra.mrb[0].mxu0 %v2089
        %v2196 = vpop.f32.mrb[0].mxu0
        %v2197 = vadd.f32 %v2112, %v2196
        %v2198 = vpop.f32.mrb[0].mxu0
        %v2199 = vpop.f32.mrb[0].mxu0
        %v2200 = vadd.f32 %v2112, %v2199
        %v2201 = vpop.f32.mrb[0].mxu0
        %2202 = vmatprep.mubr.bf16.mxu0 0
        %2203 = vmatmul.mubr.bf16.gmra.mrb[0].mxu0 %v2090
        %v2204 = vpop.f32.mrb[0].mxu0
        %v2205 = vadd.f32 %v2112, %v2204
        %v2206 = vpop.f32.mrb[0].mxu0
        %v2207 = vpop.f32.mrb[0].mxu0
        %v2208 = vadd.f32 %v2112, %v2207
        %v2209 = vpop.f32.mrb[0].mxu0
        %2210 = vdwg.mxu0
        %v2211 = vadd.f32 %v1889, %v2197
        %v2212 = vadd.f32 %v1890, %v2200
        %v2213 = vadd.f32 %v1891, %v2205
        %v2214 = vadd.f32 %v1892, %v2208
        %2215 = vst [vmem:[%s18] sm:$0xff] %v2211
        %2216 = vst [vmem:[%s18 + $0x8] sm:$0xff] %v2212
        %2217 = vst [vmem:[%s18 + $0x10] sm:$0xff] %v2213
        %2218 = vst [vmem:[%s18 + $0x18] sm:$0xff] %v2214
        // Predicated region
        $region117: #{transformer_pallas.1} parent=91 // pred_check
          %p2219 = pneg %p509
        $region118: #{transformer_pallas.1} parent=91 // pred_check_branch
          %2221 = sbr.rel (%p2219) target = $region120
        $region119: #{transformer_pallas.1} parent=91 // pred_region
          _
        $region120: #{transformer_pallas.1} parent=91 // pred_fallthru
          _
        // Predicated region
        $region121: #{transformer_pallas.1} parent=91 // pred_check
          %p2222 = pneg %p509
        $region122: #{transformer_pallas.1} parent=91 // pred_check_branch
          %2224 = sbr.rel (%p2222) target = $region124
        $region123: #{transformer_pallas.1} parent=91 // pred_region
          _
        $region124: #{transformer_pallas.1} parent=91 // pred_fallthru
          _
      $region92: #{transformer_pallas.1} parent=5 // pred_fallthru
        _
      %p2225 = scmp.le.s32.totalorder 2, %s33
      // Predicated region
      $region125: #{transformer_pallas.1} parent=5 // pred_check
        %p2226 = pneg %p2225
      $region126: #{transformer_pallas.1} parent=5 // pred_check_branch
        %2228 = sbr.rel (%p2226) target = $region128
      $region127: #{transformer_pallas.1} parent=5 // pred_region
        %s2229 = ssub.s32 %s33, 2
      $region128: #{transformer_pallas.1} parent=5 // pred_fallthru
        _
    $region6: #{transformer_pallas.1} parent=1 // loop_footer
      %s37 = sadd.s32 1, %s33
    $region7: #{transformer_pallas.1} parent=1 // loop_footer_branch
      %32 = sbr.rel target = $region3
    $region8: #{transformer_pallas.1} parent=1 // loop_exit
      _
    %2230 = vsyncpa [#allocation3], 1
    %s2231 = scalar_lea.sflag [#allocation3], 1
    %2232 = vsyncpa %s2231, 1
    %2233 = vsyncpa [#allocation5], 1
    %s2234 = scalar_lea.sflag [#allocation5], 1
    %2235 = vsyncpa %s2234, 1
    %2236 = vsyncpa [#allocation8], 1
    %s2237 = scalar_lea.sflag [#allocation8], 1
    %2238 = vsyncpa %s2237, 1

</llo_original>
